<compile_context>
chip_gen: v6e
topology: v6e:2x2x1
jax: 0.10.0
libtpu: 0.0.40
codegen_flags: <defaults>
</compile_context>

<pallas_src>
import math

import jax
import jax.numpy as jnp
from jax.experimental import pallas as pl
from jax.experimental.pallas import tpu as pltpu


def _round_up(x, m):
    return ((x + m - 1) // m) * m


def _cdiv(a, b):
    return (a + b - 1) // b


def _make_kernel(hw, thw, mask_last_spatial_tile):
    """Build the kernel body (hw / thw / mask flag are trace-time constants)."""
    inv_hw = 1.0 / float(hw)

    def kernel(x_ref, w_ref, b_ref, o_ref, acc_ref):
        # x_ref  : (TB, C, thw)  NCHW activation tile (spatial on lanes)
        # w_ref  : (C, Np)       decoder weight (transposed), resident across grid
        # b_ref  : (1, Np)       decoder bias (lane-padded), resident across grid
        # o_ref  : (TB, Np)      logits tile, written once at the last spatial step
        # acc_ref: (TB, C) f32   pooled-sum accumulator, persists across k
        k = pl.program_id(1)

        @pl.when(k == 0)
        def _init():
            acc_ref[...] = jnp.zeros_like(acc_ref)

        x = x_ref[...]
        if mask_last_spatial_tile:
            # The last spatial tile sticks out past HW; zero the out-of-bounds
            # lanes before reducing (their contents are unspecified).
            valid = hw - k * thw
            lane = jax.lax.broadcasted_iota(jnp.int32, (1, 1, thw), 2)
            x = jnp.where(lane < valid, x, jnp.zeros((), x.dtype))

        # Global-average-pool partial sum over the spatial (lane) axis; the f32
        # upcast fuses into the reduction (no full-size f32 temporary).
        acc_ref[...] += jnp.sum(x, axis=2, dtype=jnp.float32)

        @pl.when(k == pl.num_programs(1) - 1)
        def _finalize():
            # Apply 1/(H*W) to the f32 accumulator (not folded into the weights).
            pooled = acc_ref[...] * inv_hw
            out = jnp.dot(pooled.astype(w_ref.dtype), w_ref[...],
                          preferred_element_type=jnp.float32)
            o_ref[...] = (out + b_ref[...].astype(jnp.float32)).astype(o_ref.dtype)

    return kernel


def resnet_decoder(x_nchw, weight, bias):
    """Global average pool + Linear. x_nchw: (B,C,H,W); weight: (N,C); bias: (N,)."""
    B, C, H, W = x_nchw.shape
    n_classes, in_features = weight.shape
    assert in_features == C
    HW = H * W

    out_dtype = jnp.promote_types(x_nchw.dtype, weight.dtype)
    x_item = jnp.dtype(x_nchw.dtype).itemsize
    w_item = jnp.dtype(weight.dtype).itemsize
    b_item = jnp.dtype(bias.dtype).itemsize
    o_item = jnp.dtype(out_dtype).itemsize

    # NCHW consumed directly: collapsing H,W is a free contiguous reshape; no
    # transpose, no padding copy of the activations in HBM.
    x3 = x_nchw.reshape(B, C, HW)

    # Lane-dense logits: pad only the (tiny) weight / bias / output class dim.
    Np = _round_up(n_classes, 128)
    w_p = jnp.pad(weight.T, ((0, 0), (0, Np - n_classes)))            # (C, Np)
    b_p = jnp.pad(bias.reshape(1, n_classes), ((0, 0), (0, Np - n_classes)))

    # ---- VMEM budget (per generation) ---------------------------------------
    phys_vmem = 64 * 1024 * 1024
    try:
        phys_vmem = int(getattr(pltpu.get_tpu_info(), "vmem_capacity_bytes",
                                phys_vmem)) or phys_vmem
    except Exception:
        pass
    # ~96 MiB on v5e/v6e (128 MiB physical), ~48 MiB on v7x (64 MiB physical).
    vmem_limit = int(max(16 * 1024 * 1024,
                         min(96 * 1024 * 1024, (phys_vmem * 3) // 4)))

    # Resident weight/bias budgeted at 2 buffers so the no-Buffered(1) fallback
    # also fits; the primary (single-buffered) path uses only one.
    resident_vmem = 2 * (_round_up(C, 8) * Np * w_item + 8 * Np * b_item)
    misc_vmem = (2 * 32 * Np * o_item             # double-buffered output tile
                 + 32 * _round_up(C, 128) * 4     # accumulator scratch
                 + 2 * 1024 * 1024)               # slack
    per_buf_cap = (vmem_limit - resident_vmem - misc_vmem) // 2
    per_buf_cap = int(max(1 * 1024 * 1024, min(per_buf_cap, 16 * 1024 * 1024)))
    # TODO(synk): very large decoders (n_classes*C too big for a resident weight)
    # would need a third grid axis tiling the weight instead of keeping it in VMEM.

    # ---- batch tile ----------------------------------------------------------
    # VMEM bytes of one batch row for a minimal 128-lane spatial slab.
    row_bytes = _round_up(C, 8) * 128 * x_item
    cap_rows = max(1, per_buf_cap // row_bytes)
    pad_b = 0
    if B <= min(32, cap_rows):
        TB = B                                     # one tile == full batch extent
    else:
        TB = next((t for t in (32, 16, 8) if t <= cap_rows and B % t == 0), None)
        if TB is None:
            # Rare: no sublane-friendly tile divides B -> pad the batch with zero
            # rows (the only case in which x is copied in HBM).
            TB = min(32, max(8, (cap_rows // 8) * 8))
            pad_b = (-B) % TB
    if pad_b:
        x3 = jnp.pad(x3, ((0, pad_b), (0, 0), (0, 0)))
    Bp = B + pad_b
    grid_b = Bp // TB

    # ---- spatial tile --------------------------------------------------------
    # Prefer the whole spatial extent in one block (typical decoder: HW=49);
    # otherwise a 128-multiple tile with an in-kernel mask on the last tile
    # (no spatial zero-padding of x in HBM).
    full_hw_vmem = TB * _round_up(C, 8) * _round_up(HW, 128) * x_item
    if full_hw_vmem <= per_buf_cap:
        thw, grid_k, mask_last = HW, 1, False
    else:
        max_lanes = per_buf_cap // (TB * _round_up(C, 8) * x_item)
        thw = max(128, (max_lanes // 128) * 128)
        grid_k = _cdiv(HW, thw)
        mask_last = (HW % thw) != 0

    kernel = _make_kernel(HW, thw, mask_last)

    cost = pl.CostEstimate(
        flops=int(B * C * HW + 2 * B * C * n_classes),
        transcendentals=0,
        bytes_accessed=int(B * C * HW * x_item + w_p.size * w_item
                           + b_p.size * b_item + Bp * Np * o_item),
    )

    def build_call(single_buffer_resident):
        resident_kwargs = (dict(pipeline_mode=pl.Buffered(1))
                           if single_buffer_resident else {})
        grid_spec = pltpu.PrefetchScalarGridSpec(
            num_scalar_prefetch=0,
            grid=(grid_b, grid_k),
            in_specs=[
                # Activations: new batch tile per i, new spatial tile per k.
                pl.BlockSpec((TB, C, thw), lambda i, k: (i, 0, k)),
                # Weight / bias: constant index -> resident (single-buffered).
                pl.BlockSpec((C, Np), lambda i, k: (0, 0), **resident_kwargs),
                pl.BlockSpec((1, Np), lambda i, k: (0, 0), **resident_kwargs),
            ],
            out_specs=pl.BlockSpec((TB, Np), lambda i, k: (i, 0)),
            scratch_shapes=[pltpu.VMEM((TB, C), jnp.float32)],
        )
        return pl.pallas_call(
            kernel,
            out_shape=jax.ShapeDtypeStruct((Bp, Np), out_dtype),
            grid_spec=grid_spec,
            compiler_params=pltpu.CompilerParams(
                dimension_semantics=("parallel", "arbitrary"),
                vmem_limit_bytes=vmem_limit,
            ),
            cost_estimate=cost,
        )

    # TODO(synk): for v7x small-batch inference (grid_b == 1) add a parallel
    # channel-tile axis (per-core partial matmuls) so the second TensorCore is used.
    try:
        out_p = build_call(True)(x3, w_p, b_p)
    except Exception:
        # Safety net: if this JAX build rejects pl.Buffered(1) for the resident
        # weight/bias, fall back to default double buffering (already inside the
        # VMEM budget above).
        out_p = build_call(False)(x3, w_p, b_p)

    return out_p[:B, :n_classes]


if __name__ == "__main__":
    # Small but ResNet-tail-like shapes: 7x7 feature map, 64 channels, 10 classes.
    B, C, H, W = 8, 64, 7, 7
    n_classes = 10
    in_features = C

    key = jax.random.PRNGKey(0)
    kx, kw, kb = jax.random.split(key, 3)

    x = jax.random.normal(kx, (B, C, H, W), dtype=jnp.float32)

    # Deterministic param init mimicking nn.Linear default: U(-1/sqrt(in), 1/sqrt(in))
    bound = 1.0 / math.sqrt(in_features)
    weight = jax.random.uniform(kw, (n_classes, in_features), minval=-bound,
                                maxval=bound, dtype=jnp.float32)
    bias = jax.random.uniform(kb, (n_classes,), minval=-bound, maxval=bound,
                              dtype=jnp.float32)

    out = jax.block_until_ready(resnet_decoder(x, weight, bias))

    # Pure-JAX reference check.
    ref = jnp.mean(x, axis=(2, 3)) @ weight.T + bias
    assert out.shape == (B, n_classes)
    assert jnp.allclose(out, ref, atol=1e-5, rtol=1e-5)

    print("KERNEL_OK")
</pallas_src>

<mosaic_0001>
module attributes {stable_mosaic.version = 11 : i64} {
  func.func @kernel(%arg0: i32, %arg1: i32, %arg2: memref<8x64x49xf32, #tpu.memory_space<vmem>>, %arg3: memref<64x128xf32, #tpu.memory_space<vmem>>, %arg4: memref<1x128xf32, #tpu.memory_space<vmem>>, %arg5: memref<8x128xf32, #tpu.memory_space<vmem>>, %arg6: memref<8x64xf32, #tpu.memory_space<vmem>>) attributes {dimension_semantics = [#tpu.dimension_semantics<parallel>, #tpu.dimension_semantics<arbitrary>], iteration_bounds = array<i64: 1, 1>, scalar_prefetch = 0 : i64, scratch_operands = 1 : i64, tpu.core_type = #tpu.core_type<tc>, window_params = [{transform_indices = @transform_0, window_bounds = array<i64: 8, 64, 49>}, {pipeline_mode = #tpu.pipeline_mode<synchronous>, transform_indices = @transform_1, window_bounds = array<i64: 64, 128>}, {pipeline_mode = #tpu.pipeline_mode<synchronous>, transform_indices = @transform_2, window_bounds = array<i64: 1, 128>}, {transform_indices = @transform_3, window_bounds = array<i64: 8, 128>}]} {
    %c0_i32 = arith.constant 0 : i32
    %0 = arith.cmpi eq, %arg1, %c0_i32 : i32
    %1 = arith.extui %0 : i1 to i32
    %c0_i32_0 = arith.constant 0 : i32
    %2 = arith.cmpi ne, %1, %c0_i32_0 : i32
    scf.if %2 {
      %cst_9 = arith.constant 0.000000e+00 : f32
      %11 = vector.broadcast %cst_9 : f32 to vector<8x64xf32>
      %c0_10 = arith.constant 0 : index
      %c0_11 = arith.constant 0 : index
      %12 = vector.load %arg6[%c0_10, %c0_11] : memref<8x64xf32, #tpu.memory_space<vmem>>, vector<8x64xf32>
      tpu.vector_store %arg6[%c0_10, %c0_11], %11 {strides = array<i32>} : memref<8x64xf32, #tpu.memory_space<vmem>>, vector<8x64xf32>,
    } else {
    }
    %c0 = arith.constant 0 : index
    %c0_1 = arith.constant 0 : index
    %c0_2 = arith.constant 0 : index
    %3 = vector.load %arg2[%c0, %c0_1, %c0_2] : memref<8x64x49xf32, #tpu.memory_space<vmem>>, vector<8x64x49xf32>
    %c0_3 = arith.constant 0 : index
    %c0_4 = arith.constant 0 : index
    %4 = vector.load %arg6[%c0_3, %c0_4] : memref<8x64xf32, #tpu.memory_space<vmem>>, vector<8x64xf32>
    %cst = arith.constant dense<0.000000e+00> : vector<8x64xf32>
    %5 = vector.multi_reduction <add>, %3, %cst [2] : vector<8x64x49xf32> to vector<8x64xf32>
    %6 = arith.addf %4, %5 : vector<8x64xf32>
    %c0_5 = arith.constant 0 : index
    %c0_6 = arith.constant 0 : index
    %7 = vector.load %arg6[%c0_5, %c0_6] : memref<8x64xf32, #tpu.memory_space<vmem>>, vector<8x64xf32>
    tpu.vector_store %arg6[%c0_5, %c0_6], %6 {strides = array<i32>} : memref<8x64xf32, #tpu.memory_space<vmem>>, vector<8x64xf32>,
    %c0_i32_7 = arith.constant 0 : i32
    %8 = arith.cmpi eq, %arg1, %c0_i32_7 : i32
    %9 = arith.extui %8 : i1 to i32
    %c0_i32_8 = arith.constant 0 : i32
    %10 = arith.cmpi ne, %9, %c0_i32_8 : i32
    scf.if %10 {
      %c0_9 = arith.constant 0 : index
      %c0_10 = arith.constant 0 : index
      %11 = vector.load %arg6[%c0_9, %c0_10] : memref<8x64xf32, #tpu.memory_space<vmem>>, vector<8x64xf32>
      %cst_11 = arith.constant 0.0204081628 : f32
      %12 = vector.broadcast %cst_11 : f32 to vector<8x64xf32>
      %13 = arith.mulf %11, %12 : vector<8x64xf32>
      %c0_12 = arith.constant 0 : index
      %c0_13 = arith.constant 0 : index
      %14 = vector.load %arg3[%c0_12, %c0_13] : memref<64x128xf32, #tpu.memory_space<vmem>>, vector<64x128xf32>
      %cst_14 = arith.constant dense<0.000000e+00> : vector<8x128xf32>
      %15 = tpu.matmul %13, %14, %cst_14 {dimension_numbers = #tpu.dot_dimension_numbers<[1], [0], [0], [1], [0, 0, 1, 1], [], []>} : vector<8x64xf32>, vector<64x128xf32>, vector<8x128xf32> -> vector<8x128xf32>
      %c0_15 = arith.constant 0 : index
      %c0_16 = arith.constant 0 : index
      %16 = vector.load %arg4[%c0_15, %c0_16] : memref<1x128xf32, #tpu.memory_space<vmem>>, vector<1x128xf32>
      %17 = vector.broadcast %16 : vector<1x128xf32> to vector<8x128xf32>
      %18 = arith.addf %15, %17 : vector<8x128xf32>
      %c0_17 = arith.constant 0 : index
      %c0_18 = arith.constant 0 : index
      %19 = vector.load %arg5[%c0_17, %c0_18] : memref<8x128xf32, #tpu.memory_space<vmem>>, vector<8x128xf32>
      tpu.vector_store %arg5[%c0_17, %c0_18], %18 {strides = array<i32>} : memref<8x128xf32, #tpu.memory_space<vmem>>, vector<8x128xf32>,
    } else {
    }
    return
  }
  func.func @transform_0(%arg0: i32, %arg1: i32) -> (i32, i32, i32) {
    %c0_i32 = arith.constant 0 : i32
    %c0_i32_0 = arith.constant 0 : i32
    return %arg0, %c0_i32, %arg1 : i32, i32, i32
  }
  func.func @transform_1(%arg0: i32, %arg1: i32) -> (i32, i32) {
    %c0_i32 = arith.constant 0 : i32
    %c0_i32_0 = arith.constant 0 : i32
    %c0_i32_1 = arith.constant 0 : i32
    return %c0_i32, %c0_i32_0 : i32, i32
  }
  func.func @transform_2(%arg0: i32, %arg1: i32) -> (i32, i32) {
    %c0_i32 = arith.constant 0 : i32
    %c0_i32_0 = arith.constant 0 : i32
    %c0_i32_1 = arith.constant 0 : i32
    return %c0_i32, %c0_i32_0 : i32, i32
  }
  func.func @transform_3(%arg0: i32, %arg1: i32) -> (i32, i32) {
    %c0_i32 = arith.constant 0 : i32
    %c0_i32_0 = arith.constant 0 : i32
    return %arg0, %c0_i32 : i32, i32
  }
}

module attributes {stable_mosaic.version = 11 : i64} {
  func.func @kernel(%arg0: i32, %arg1: i32, %arg2: memref<8x64x49xf32, #tpu.memory_space<vmem>>, %arg3: memref<64x128xf32, #tpu.memory_space<vmem>>, %arg4: memref<1x128xf32, #tpu.memory_space<vmem>>, %arg5: memref<8x128xf32, #tpu.memory_space<vmem>>, %arg6: memref<8x64xf32, #tpu.memory_space<vmem>>) attributes {dimension_semantics = [#tpu.dimension_semantics<parallel>, #tpu.dimension_semantics<arbitrary>], iteration_bounds = array<i64: 1, 1>, scalar_prefetch = 0 : i64, scratch_operands = 1 : i64, tpu.core_type = #tpu.core_type<tc>, window_params = [{transform_indices = @transform_0, window_bounds = array<i64: 8, 64, 49>}, {pipeline_mode = #tpu.pipeline_mode<synchronous>, transform_indices = @transform_1, window_bounds = array<i64: 64, 128>}, {pipeline_mode = #tpu.pipeline_mode<synchronous>, transform_indices = @transform_2, window_bounds = array<i64: 1, 128>}, {transform_indices = @transform_3, window_bounds = array<i64: 8, 128>}]} {
    %c0_i32 = arith.constant 0 : i32
    %0 = arith.cmpi eq, %arg1, %c0_i32 : i32
    %1 = arith.extui %0 : i1 to i32
    %c0_i32_0 = arith.constant 0 : i32
    %2 = arith.cmpi ne, %1, %c0_i32_0 : i32
    scf.if %2 {
      %cst_9 = arith.constant 0.000000e+00 : f32
      %11 = vector.broadcast %cst_9 : f32 to vector<8x64xf32>
      %c0_10 = arith.constant 0 : index
      %c0_11 = arith.constant 0 : index
      %12 = vector.load %arg6[%c0_10, %c0_11] : memref<8x64xf32, #tpu.memory_space<vmem>>, vector<8x64xf32>
      tpu.vector_store %arg6[%c0_10, %c0_11], %11 {strides = array<i32>} : memref<8x64xf32, #tpu.memory_space<vmem>>, vector<8x64xf32>,
    } else {
    }
    %c0 = arith.constant 0 : index
    %c0_1 = arith.constant 0 : index
    %c0_2 = arith.constant 0 : index
    %3 = vector.load %arg2[%c0, %c0_1, %c0_2] : memref<8x64x49xf32, #tpu.memory_space<vmem>>, vector<8x64x49xf32>
    %c0_3 = arith.constant 0 : index
    %c0_4 = arith.constant 0 : index
    %4 = vector.load %arg6[%c0_3, %c0_4] : memref<8x64xf32, #tpu.memory_space<vmem>>, vector<8x64xf32>
    %cst = arith.constant dense<0.000000e+00> : vector<8x64xf32>
    %5 = vector.multi_reduction <add>, %3, %cst [2] : vector<8x64x49xf32> to vector<8x64xf32>
    %6 = arith.addf %4, %5 : vector<8x64xf32>
    %c0_5 = arith.constant 0 : index
    %c0_6 = arith.constant 0 : index
    %7 = vector.load %arg6[%c0_5, %c0_6] : memref<8x64xf32, #tpu.memory_space<vmem>>, vector<8x64xf32>
    tpu.vector_store %arg6[%c0_5, %c0_6], %6 {strides = array<i32>} : memref<8x64xf32, #tpu.memory_space<vmem>>, vector<8x64xf32>,
    %c0_i32_7 = arith.constant 0 : i32
    %8 = arith.cmpi eq, %arg1, %c0_i32_7 : i32
    %9 = arith.extui %8 : i1 to i32
    %c0_i32_8 = arith.constant 0 : i32
    %10 = arith.cmpi ne, %9, %c0_i32_8 : i32
    scf.if %10 {
      %c0_9 = arith.constant 0 : index
      %c0_10 = arith.constant 0 : index
      %11 = vector.load %arg6[%c0_9, %c0_10] : memref<8x64xf32, #tpu.memory_space<vmem>>, vector<8x64xf32>
      %cst_11 = arith.constant 0.0204081628 : f32
      %12 = vector.broadcast %cst_11 : f32 to vector<8x64xf32>
      %13 = arith.mulf %11, %12 : vector<8x64xf32>
      %c0_12 = arith.constant 0 : index
      %c0_13 = arith.constant 0 : index
      %14 = vector.load %arg3[%c0_12, %c0_13] : memref<64x128xf32, #tpu.memory_space<vmem>>, vector<64x128xf32>
      %cst_14 = arith.constant dense<0.000000e+00> : vector<8x128xf32>
      %15 = tpu.matmul %13, %14, %cst_14 {dimension_numbers = #tpu.dot_dimension_numbers<[1], [0], [0], [1], [0, 0, 1, 1], [], []>} : vector<8x64xf32>, vector<64x128xf32>, vector<8x128xf32> -> vector<8x128xf32>
      %c0_15 = arith.constant 0 : index
      %c0_16 = arith.constant 0 : index
      %16 = vector.load %arg4[%c0_15, %c0_16] : memref<1x128xf32, #tpu.memory_space<vmem>>, vector<1x128xf32>
      %17 = vector.broadcast %16 : vector<1x128xf32> to vector<8x128xf32>
      %18 = arith.addf %15, %17 : vector<8x128xf32>
      %c0_17 = arith.constant 0 : index
      %c0_18 = arith.constant 0 : index
      %19 = vector.load %arg5[%c0_17, %c0_18] : memref<8x128xf32, #tpu.memory_space<vmem>>, vector<8x128xf32>
      tpu.vector_store %arg5[%c0_17, %c0_18], %18 {strides = array<i32>} : memref<8x128xf32, #tpu.memory_space<vmem>>, vector<8x128xf32>,
    } else {
    }
    return
  }
  func.func @transform_0(%arg0: i32, %arg1: i32) -> (i32, i32, i32) {
    %c0_i32 = arith.constant 0 : i32
    %c0_i32_0 = arith.constant 0 : i32
    return %arg0, %c0_i32, %arg1 : i32, i32, i32
  }
  func.func @transform_1(%arg0: i32, %arg1: i32) -> (i32, i32) {
    %c0_i32 = arith.constant 0 : i32
    %c0_i32_0 = arith.constant 0 : i32
    %c0_i32_1 = arith.constant 0 : i32
    return %c0_i32, %c0_i32_0 : i32, i32
  }
  func.func @transform_2(%arg0: i32, %arg1: i32) -> (i32, i32) {
    %c0_i32 = arith.constant 0 : i32
    %c0_i32_0 = arith.constant 0 : i32
    %c0_i32_1 = arith.constant 0 : i32
    return %c0_i32, %c0_i32_0 : i32, i32
  }
  func.func @transform_3(%arg0: i32, %arg1: i32) -> (i32, i32) {
    %c0_i32 = arith.constant 0 : i32
    %c0_i32_0 = arith.constant 0 : i32
    return %arg0, %c0_i32 : i32, i32
  }
}

</mosaic_0001>

<llo_original>
// kernel: tpu_custom_call.1
$region0: #{tpu_custom_call.1}
  #allocation0 [shape = 'u32[]', space=smem, size = 0x4, offset = 0x4, fixed_abs, tag = 'smem constant byte address 0x4 - core index']
  #allocation1 [shape = 'u32[144,128]{1,0:T(1,128)}', space=vmem, size = 0x12000, scoped, tag = 'internal scratch']
  #allocation2 [shape = 'f32[8,64]{1,0:T(8,128)}', space=vmem, size = 0x1000, scoped, tag = 'scratch operand']
  %s0 = inlined_call_operand.vmem [shape: f32[8,64,49], index: 0, kind: input, shape index: {}]
  %s1 = inlined_call_operand.vmem [shape: f32[64,128], index: 1, kind: input, shape index: {}]
  %s2 = inlined_call_operand.vmem [shape: f32[1,128], index: 2, kind: input, shape index: {}]
  %s3 = inlined_call_operand.hbm [shape: f32[8,128], index: 3, kind: output, shape index: {}]
  %s4 = sld [smem:[#allocation0]]
  $region30: #{tpu_custom_call.1} parent=0
    _
  %s6 = ssub.s32 1, %s4
  %s7 = scalar_select 0, %s6, %s4
  $region1: #{tpu_custom_call.1} parent=0
    #allocation3 [shape = 'u8[4096]{0}', space=vmem, size = 0x1000, scoped, tag = 'output window, operand 0, single buffered']
    #allocation4 [shape = 's32[1]{0}', space=sflag, size = 0x4, scoped, tag = 'scoped memory for tpu_custom_call.1']
    %8 = vsyncpa [#allocation4], 0
    // Predicated region
    $region2: #{tpu_custom_call.1} parent=1 // pred_check
      _
    $region3: #{tpu_custom_call.1} parent=1 // pred_check_branch
      %10 = sbr.rel (0) target = $region5
    $region4: #{tpu_custom_call.1} parent=1 // pred_region
      _
    $region5: #{tpu_custom_call.1} parent=1 // pred_fallthru
      _
    // Predicated region
    $region6: #{tpu_custom_call.1} parent=1 // pred_check
      _
    $region7: #{tpu_custom_call.1} parent=1 // pred_check_branch
      %12 = sbr.rel (0) target = $region9
    $region8: #{tpu_custom_call.1} parent=1 // pred_region
      _
    $region9: #{tpu_custom_call.1} parent=1 // pred_fallthru
      _
    // Predicated region
    $region10: #{tpu_custom_call.1} parent=1 // pred_check
      _
    $region11: #{tpu_custom_call.1} parent=1 // pred_check_branch
      %14 = sbr.rel (0) target = $region13
    $region12: #{tpu_custom_call.1} parent=1 // pred_region
      _
    $region13: #{tpu_custom_call.1} parent=1 // pred_fallthru
      _
    %p15 = scmp.eq.s32.totalorder 0, 0
    // Predicated region
    $region14: #{tpu_custom_call.1} parent=1 // pred_check
      %p16 = pneg %p15
    $region15: #{tpu_custom_call.1} parent=1 // pred_check_branch
      %18 = sbr.rel (%p16) target = $region17
    $region16: #{tpu_custom_call.1} parent=1 // pred_region
      %vm19 = vcmask 523264
      %20 = vst.msk [vmem:[#allocation2] sm:$0xff] %vm19, 0.0
    $region17: #{tpu_custom_call.1} parent=1 // pred_fallthru
      _
    %v21 = vld [vmem:[%s0] sm:$0xff]
    %v22 = vld [vmem:[%s0 + $0x8] sm:$0xff]
    %v23 = vld [vmem:[%s0 + $0x10] sm:$0xff]
    %v24 = vld [vmem:[%s0 + $0x18] sm:$0xff]
    %v25 = vld [vmem:[%s0 + $0x20] sm:$0xff]
    %v26 = vld [vmem:[%s0 + $0x28] sm:$0xff]
    %v27 = vld [vmem:[%s0 + $0x30] sm:$0xff]
    %v28 = vld [vmem:[%s0 + $0x38] sm:$0xff]
    %v29 = vld [vmem:[%s0 + $0x40] sm:$0xff]
    %v30 = vld [vmem:[%s0 + $0x48] sm:$0xff]
    %v31 = vld [vmem:[%s0 + $0x50] sm:$0xff]
    %v32 = vld [vmem:[%s0 + $0x58] sm:$0xff]
    %v33 = vld [vmem:[%s0 + $0x60] sm:$0xff]
    %v34 = vld [vmem:[%s0 + $0x68] sm:$0xff]
    %v35 = vld [vmem:[%s0 + $0x70] sm:$0xff]
    %v36 = vld [vmem:[%s0 + $0x78] sm:$0xff]
    %v37 = vld [vmem:[%s0 + $0x80] sm:$0xff]
    %v38 = vld [vmem:[%s0 + $0x88] sm:$0xff]
    %v39 = vld [vmem:[%s0 + $0x90] sm:$0xff]
    %v40 = vld [vmem:[%s0 + $0x98] sm:$0xff]
    %v41 = vld [vmem:[%s0 + $0xa0] sm:$0xff]
    %v42 = vld [vmem:[%s0 + $0xa8] sm:$0xff]
    %v43 = vld [vmem:[%s0 + $0xb0] sm:$0xff]
    %v44 = vld [vmem:[%s0 + $0xb8] sm:$0xff]
    %v45 = vld [vmem:[%s0 + $0xc0] sm:$0xff]
    %v46 = vld [vmem:[%s0 + $0xc8] sm:$0xff]
    %v47 = vld [vmem:[%s0 + $0xd0] sm:$0xff]
    %v48 = vld [vmem:[%s0 + $0xd8] sm:$0xff]
    %v49 = vld [vmem:[%s0 + $0xe0] sm:$0xff]
    %v50 = vld [vmem:[%s0 + $0xe8] sm:$0xff]
    %v51 = vld [vmem:[%s0 + $0xf0] sm:$0xff]
    %v52 = vld [vmem:[%s0 + $0xf8] sm:$0xff]
    %v53 = vld [vmem:[%s0 + $0x100] sm:$0xff]
    %v54 = vld [vmem:[%s0 + $0x108] sm:$0xff]
    %v55 = vld [vmem:[%s0 + $0x110] sm:$0xff]
    %v56 = vld [vmem:[%s0 + $0x118] sm:$0xff]
    %v57 = vld [vmem:[%s0 + $0x120] sm:$0xff]
    %v58 = vld [vmem:[%s0 + $0x128] sm:$0xff]
    %v59 = vld [vmem:[%s0 + $0x130] sm:$0xff]
    %v60 = vld [vmem:[%s0 + $0x138] sm:$0xff]
    %v61 = vld [vmem:[%s0 + $0x140] sm:$0xff]
    %v62 = vld [vmem:[%s0 + $0x148] sm:$0xff]
    %v63 = vld [vmem:[%s0 + $0x150] sm:$0xff]
    %v64 = vld [vmem:[%s0 + $0x158] sm:$0xff]
    %v65 = vld [vmem:[%s0 + $0x160] sm:$0xff]
    %v66 = vld [vmem:[%s0 + $0x168] sm:$0xff]
    %v67 = vld [vmem:[%s0 + $0x170] sm:$0xff]
    %v68 = vld [vmem:[%s0 + $0x178] sm:$0xff]
    %v69 = vld [vmem:[%s0 + $0x180] sm:$0xff]
    %v70 = vld [vmem:[%s0 + $0x188] sm:$0xff]
    %v71 = vld [vmem:[%s0 + $0x190] sm:$0xff]
    %v72 = vld [vmem:[%s0 + $0x198] sm:$0xff]
    %v73 = vld [vmem:[%s0 + $0x1a0] sm:$0xff]
    %v74 = vld [vmem:[%s0 + $0x1a8] sm:$0xff]
    %v75 = vld [vmem:[%s0 + $0x1b0] sm:$0xff]
    %v76 = vld [vmem:[%s0 + $0x1b8] sm:$0xff]
    %v77 = vld [vmem:[%s0 + $0x1c0] sm:$0xff]
    %v78 = vld [vmem:[%s0 + $0x1c8] sm:$0xff]
    %v79 = vld [vmem:[%s0 + $0x1d0] sm:$0xff]
    %v80 = vld [vmem:[%s0 + $0x1d8] sm:$0xff]
    %v81 = vld [vmem:[%s0 + $0x1e0] sm:$0xff]
    %v82 = vld [vmem:[%s0 + $0x1e8] sm:$0xff]
    %v83 = vld [vmem:[%s0 + $0x1f0] sm:$0xff]
    %v84 = vld [vmem:[%s0 + $0x1f8] sm:$0xff]
    %v85 = vld [vmem:[#allocation2] sm:$0xff]
    %vm86 = vcmask 400384
    %v87 = vsel %vm86, %v21, 0.0
    %88 = vadd.xlane.f32.xlu0 %v87
    %v89 = vpop.xlane.xlu0 %88
    %v90 = vsel %vm86, %v22, 0.0
    %91 = vadd.xlane.f32.xlu0 %v90
    %v92 = vpop.xlane.xlu0 %91
    %v93 = vsel %vm86, %v23, 0.0
    %94 = vadd.xlane.f32.xlu0 %v93
    %v95 = vpop.xlane.xlu0 %94
    %v96 = vsel %vm86, %v24, 0.0
    %97 = vadd.xlane.f32.xlu0 %v96
    %v98 = vpop.xlane.xlu0 %97
    %v99 = vsel %vm86, %v25, 0.0
    %100 = vadd.xlane.f32.xlu0 %v99
    %v101 = vpop.xlane.xlu0 %100
    %v102 = vsel %vm86, %v26, 0.0
    %103 = vadd.xlane.f32.xlu0 %v102
    %v104 = vpop.xlane.xlu0 %103
    %v105 = vsel %vm86, %v27, 0.0
    %106 = vadd.xlane.f32.xlu0 %v105
    %v107 = vpop.xlane.xlu0 %106
    %v108 = vsel %vm86, %v28, 0.0
    %109 = vadd.xlane.f32.xlu0 %v108
    %v110 = vpop.xlane.xlu0 %109
    %v111 = vsel %vm86, %v29, 0.0
    %112 = vadd.xlane.f32.xlu0 %v111
    %v113 = vpop.xlane.xlu0 %112
    %v114 = vsel %vm86, %v30, 0.0
    %115 = vadd.xlane.f32.xlu0 %v114
    %v116 = vpop.xlane.xlu0 %115
    %v117 = vsel %vm86, %v31, 0.0
    %118 = vadd.xlane.f32.xlu0 %v117
    %v119 = vpop.xlane.xlu0 %118
    %v120 = vsel %vm86, %v32, 0.0
    %121 = vadd.xlane.f32.xlu0 %v120
    %v122 = vpop.xlane.xlu0 %121
    %v123 = vsel %vm86, %v33, 0.0
    %124 = vadd.xlane.f32.xlu0 %v123
    %v125 = vpop.xlane.xlu0 %124
    %v126 = vsel %vm86, %v34, 0.0
    %127 = vadd.xlane.f32.xlu0 %v126
    %v128 = vpop.xlane.xlu0 %127
    %v129 = vsel %vm86, %v35, 0.0
    %130 = vadd.xlane.f32.xlu0 %v129
    %v131 = vpop.xlane.xlu0 %130
    %v132 = vsel %vm86, %v36, 0.0
    %133 = vadd.xlane.f32.xlu0 %v132
    %v134 = vpop.xlane.xlu0 %133
    %v135 = vsel %vm86, %v37, 0.0
    %136 = vadd.xlane.f32.xlu0 %v135
    %v137 = vpop.xlane.xlu0 %136
    %v138 = vsel %vm86, %v38, 0.0
    %139 = vadd.xlane.f32.xlu0 %v138
    %v140 = vpop.xlane.xlu0 %139
    %v141 = vsel %vm86, %v39, 0.0
    %142 = vadd.xlane.f32.xlu0 %v141
    %v143 = vpop.xlane.xlu0 %142
    %v144 = vsel %vm86, %v40, 0.0
    %145 = vadd.xlane.f32.xlu0 %v144
    %v146 = vpop.xlane.xlu0 %145
    %v147 = vsel %vm86, %v41, 0.0
    %148 = vadd.xlane.f32.xlu0 %v147
    %v149 = vpop.xlane.xlu0 %148
    %v150 = vsel %vm86, %v42, 0.0
    %151 = vadd.xlane.f32.xlu0 %v150
    %v152 = vpop.xlane.xlu0 %151
    %v153 = vsel %vm86, %v43, 0.0
    %154 = vadd.xlane.f32.xlu0 %v153
    %v155 = vpop.xlane.xlu0 %154
    %v156 = vsel %vm86, %v44, 0.0
    %157 = vadd.xlane.f32.xlu0 %v156
    %v158 = vpop.xlane.xlu0 %157
    %v159 = vsel %vm86, %v45, 0.0
    %160 = vadd.xlane.f32.xlu0 %v159
    %v161 = vpop.xlane.xlu0 %160
    %v162 = vsel %vm86, %v46, 0.0
    %163 = vadd.xlane.f32.xlu0 %v162
    %v164 = vpop.xlane.xlu0 %163
    %v165 = vsel %vm86, %v47, 0.0
    %166 = vadd.xlane.f32.xlu0 %v165
    %v167 = vpop.xlane.xlu0 %166
    %v168 = vsel %vm86, %v48, 0.0
    %169 = vadd.xlane.f32.xlu0 %v168
    %v170 = vpop.xlane.xlu0 %169
    %v171 = vsel %vm86, %v49, 0.0
    %172 = vadd.xlane.f32.xlu0 %v171
    %v173 = vpop.xlane.xlu0 %172
    %v174 = vsel %vm86, %v50, 0.0
    %175 = vadd.xlane.f32.xlu0 %v174
    %v176 = vpop.xlane.xlu0 %175
    %v177 = vsel %vm86, %v51, 0.0
    %178 = vadd.xlane.f32.xlu0 %v177
    %v179 = vpop.xlane.xlu0 %178
    %v180 = vsel %vm86, %v52, 0.0
    %181 = vadd.xlane.f32.xlu0 %v180
    %v182 = vpop.xlane.xlu0 %181
    %v183 = vsel %vm86, %v53, 0.0
    %184 = vadd.xlane.f32.xlu0 %v183
    %v185 = vpop.xlane.xlu0 %184
    %v186 = vsel %vm86, %v54, 0.0
    %187 = vadd.xlane.f32.xlu0 %v186
    %v188 = vpop.xlane.xlu0 %187
    %v189 = vsel %vm86, %v55, 0.0
    %190 = vadd.xlane.f32.xlu0 %v189
    %v191 = vpop.xlane.xlu0 %190
    %v192 = vsel %vm86, %v56, 0.0
    %193 = vadd.xlane.f32.xlu0 %v192
    %v194 = vpop.xlane.xlu0 %193
    %v195 = vsel %vm86, %v57, 0.0
    %196 = vadd.xlane.f32.xlu0 %v195
    %v197 = vpop.xlane.xlu0 %196
    %v198 = vsel %vm86, %v58, 0.0
    %199 = vadd.xlane.f32.xlu0 %v198
    %v200 = vpop.xlane.xlu0 %199
    %v201 = vsel %vm86, %v59, 0.0
    %202 = vadd.xlane.f32.xlu0 %v201
    %v203 = vpop.xlane.xlu0 %202
    %v204 = vsel %vm86, %v60, 0.0
    %205 = vadd.xlane.f32.xlu0 %v204
    %v206 = vpop.xlane.xlu0 %205
    %v207 = vsel %vm86, %v61, 0.0
    %208 = vadd.xlane.f32.xlu0 %v207
    %v209 = vpop.xlane.xlu0 %208
    %v210 = vsel %vm86, %v62, 0.0
    %211 = vadd.xlane.f32.xlu0 %v210
    %v212 = vpop.xlane.xlu0 %211
    %v213 = vsel %vm86, %v63, 0.0
    %214 = vadd.xlane.f32.xlu0 %v213
    %v215 = vpop.xlane.xlu0 %214
    %v216 = vsel %vm86, %v64, 0.0
    %217 = vadd.xlane.f32.xlu0 %v216
    %v218 = vpop.xlane.xlu0 %217
    %v219 = vsel %vm86, %v65, 0.0
    %220 = vadd.xlane.f32.xlu0 %v219
    %v221 = vpop.xlane.xlu0 %220
    %v222 = vsel %vm86, %v66, 0.0
    %223 = vadd.xlane.f32.xlu0 %v222
    %v224 = vpop.xlane.xlu0 %223
    %v225 = vsel %vm86, %v67, 0.0
    %226 = vadd.xlane.f32.xlu0 %v225
    %v227 = vpop.xlane.xlu0 %226
    %v228 = vsel %vm86, %v68, 0.0
    %229 = vadd.xlane.f32.xlu0 %v228
    %v230 = vpop.xlane.xlu0 %229
    %v231 = vsel %vm86, %v69, 0.0
    %232 = vadd.xlane.f32.xlu0 %v231
    %v233 = vpop.xlane.xlu0 %232
    %v234 = vsel %vm86, %v70, 0.0
    %235 = vadd.xlane.f32.xlu0 %v234
    %v236 = vpop.xlane.xlu0 %235
    %v237 = vsel %vm86, %v71, 0.0
    %238 = vadd.xlane.f32.xlu0 %v237
    %v239 = vpop.xlane.xlu0 %238
    %v240 = vsel %vm86, %v72, 0.0
    %241 = vadd.xlane.f32.xlu0 %v240
    %v242 = vpop.xlane.xlu0 %241
    %v243 = vsel %vm86, %v73, 0.0
    %244 = vadd.xlane.f32.xlu0 %v243
    %v245 = vpop.xlane.xlu0 %244
    %v246 = vsel %vm86, %v74, 0.0
    %247 = vadd.xlane.f32.xlu0 %v246
    %v248 = vpop.xlane.xlu0 %247
    %v249 = vsel %vm86, %v75, 0.0
    %250 = vadd.xlane.f32.xlu0 %v249
    %v251 = vpop.xlane.xlu0 %250
    %v252 = vsel %vm86, %v76, 0.0
    %253 = vadd.xlane.f32.xlu0 %v252
    %v254 = vpop.xlane.xlu0 %253
    %v255 = vsel %vm86, %v77, 0.0
    %256 = vadd.xlane.f32.xlu0 %v255
    %v257 = vpop.xlane.xlu0 %256
    %v258 = vsel %vm86, %v78, 0.0
    %259 = vadd.xlane.f32.xlu0 %v258
    %v260 = vpop.xlane.xlu0 %259
    %v261 = vsel %vm86, %v79, 0.0
    %262 = vadd.xlane.f32.xlu0 %v261
    %v263 = vpop.xlane.xlu0 %262
    %v264 = vsel %vm86, %v80, 0.0
    %265 = vadd.xlane.f32.xlu0 %v264
    %v266 = vpop.xlane.xlu0 %265
    %v267 = vsel %vm86, %v81, 0.0
    %268 = vadd.xlane.f32.xlu0 %v267
    %v269 = vpop.xlane.xlu0 %268
    %v270 = vsel %vm86, %v82, 0.0
    %271 = vadd.xlane.f32.xlu0 %v270
    %v272 = vpop.xlane.xlu0 %271
    %v273 = vsel %vm86, %v83, 0.0
    %274 = vadd.xlane.f32.xlu0 %v273
    %v275 = vpop.xlane.xlu0 %274
    %v276 = vsel %vm86, %v84, 0.0
    %277 = vadd.xlane.f32.xlu0 %v276
    %v278 = vpop.xlane.xlu0 %277
    %v343 = vlaneseq
    %v344 = vand.u32 %v343, 127
    %v345 = vlaneseq
    %v346 = vshrl.u32 %v345, 7
    %v347 = vsub.s32 %v344, %v346
    %v348 = vrot.slane %v89, %v347
    %v349 = vadd.s32 %v344, 4294967288
    %v350 = vlaneseq
    %v351 = vshrl.u32 %v350, 7
    %v352 = vsub.s32 %v349, %v351
    %v353 = vrot.slane %v92, %v352
    %vm354 = vcmask 130112
    %v355 = vsel %vm354, %v353, %v348
    %v356 = vadd.s32 %v344, 4294967280
    %v357 = vlaneseq
    %v358 = vshrl.u32 %v357, 7
    %v359 = vsub.s32 %v356, %v358
    %v360 = vrot.slane %v95, %v359
    %vm361 = vcmask 195712
    %v362 = vsel %vm361, %v360, %v355
    %v363 = vadd.s32 %v344, 4294967272
    %v364 = vlaneseq
    %v365 = vshrl.u32 %v364, 7
    %v366 = vsub.s32 %v363, %v365
    %v367 = vrot.slane %v98, %v366
    %vm368 = vcmask 261312
    %v369 = vsel %vm368, %v367, %v362
    %v370 = vadd.s32 %v344, 4294967264
    %v371 = vlaneseq
    %v372 = vshrl.u32 %v371, 7
    %v373 = vsub.s32 %v370, %v372
    %v374 = vrot.slane %v101, %v373
    %vm375 = vcmask 326912
    %v376 = vsel %vm375, %v374, %v369
    %v377 = vadd.s32 %v344, 4294967256
    %v378 = vlaneseq
    %v379 = vshrl.u32 %v378, 7
    %v380 = vsub.s32 %v377, %v379
    %v381 = vrot.slane %v104, %v380
    %vm382 = vcmask 392512
    %v383 = vsel %vm382, %v381, %v376
    %v384 = vadd.s32 %v344, 4294967248
    %v385 = vlaneseq
    %v386 = vshrl.u32 %v385, 7
    %v387 = vsub.s32 %v384, %v386
    %v388 = vrot.slane %v107, %v387
    %vm389 = vcmask 458112
    %v390 = vsel %vm389, %v388, %v383
    %v391 = vadd.s32 %v344, 4294967240
    %v392 = vlaneseq
    %v393 = vshrl.u32 %v392, 7
    %v394 = vsub.s32 %v391, %v393
    %v395 = vrot.slane %v110, %v394
    %vm396 = vcmask 523712
    %v397 = vsel %vm396, %v395, %v390
    %v398 = vlaneseq
    %v399 = vshrl.u32 %v398, 7
    %v400 = vsub.s32 %v344, %v399
    %v401 = vrot.slane %v113, %v400
    %v402 = vlaneseq
    %v403 = vshrl.u32 %v402, 7
    %v404 = vsub.s32 %v349, %v403
    %v405 = vrot.slane %v116, %v404
    %v406 = vsel %vm354, %v405, %v401
    %v407 = vlaneseq
    %v408 = vshrl.u32 %v407, 7
    %v409 = vsub.s32 %v356, %v408
    %v410 = vrot.slane %v119, %v409
    %v411 = vsel %vm361, %v410, %v406
    %v412 = vlaneseq
    %v413 = vshrl.u32 %v412, 7
    %v414 = vsub.s32 %v363, %v413
    %v415 = vrot.slane %v122, %v414
    %v416 = vsel %vm368, %v415, %v411
    %v417 = vlaneseq
    %v418 = vshrl.u32 %v417, 7
    %v419 = vsub.s32 %v370, %v418
    %v420 = vrot.slane %v125, %v419
    %v421 = vsel %vm375, %v420, %v416
    %v422 = vlaneseq
    %v423 = vshrl.u32 %v422, 7
    %v424 = vsub.s32 %v377, %v423
    %v425 = vrot.slane %v128, %v424
    %v426 = vsel %vm382, %v425, %v421
    %v427 = vlaneseq
    %v428 = vshrl.u32 %v427, 7
    %v429 = vsub.s32 %v384, %v428
    %v430 = vrot.slane %v131, %v429
    %v431 = vsel %vm389, %v430, %v426
    %v432 = vlaneseq
    %v433 = vshrl.u32 %v432, 7
    %v434 = vsub.s32 %v391, %v433
    %v435 = vrot.slane %v134, %v434
    %v436 = vsel %vm396, %v435, %v431
    %v437 = vlaneseq
    %v438 = vshrl.u32 %v437, 7
    %v439 = vsub.s32 %v344, %v438
    %v440 = vrot.slane %v137, %v439
    %v441 = vlaneseq
    %v442 = vshrl.u32 %v441, 7
    %v443 = vsub.s32 %v349, %v442
    %v444 = vrot.slane %v140, %v443
    %v445 = vsel %vm354, %v444, %v440
    %v446 = vlaneseq
    %v447 = vshrl.u32 %v446, 7
    %v448 = vsub.s32 %v356, %v447
    %v449 = vrot.slane %v143, %v448
    %v450 = vsel %vm361, %v449, %v445
    %v451 = vlaneseq
    %v452 = vshrl.u32 %v451, 7
    %v453 = vsub.s32 %v363, %v452
    %v454 = vrot.slane %v146, %v453
    %v455 = vsel %vm368, %v454, %v450
    %v456 = vlaneseq
    %v457 = vshrl.u32 %v456, 7
    %v458 = vsub.s32 %v370, %v457
    %v459 = vrot.slane %v149, %v458
    %v460 = vsel %vm375, %v459, %v455
    %v461 = vlaneseq
    %v462 = vshrl.u32 %v461, 7
    %v463 = vsub.s32 %v377, %v462
    %v464 = vrot.slane %v152, %v463
    %v465 = vsel %vm382, %v464, %v460
    %v466 = vlaneseq
    %v467 = vshrl.u32 %v466, 7
    %v468 = vsub.s32 %v384, %v467
    %v469 = vrot.slane %v155, %v468
    %v470 = vsel %vm389, %v469, %v465
    %v471 = vlaneseq
    %v472 = vshrl.u32 %v471, 7
    %v473 = vsub.s32 %v391, %v472
    %v474 = vrot.slane %v158, %v473
    %v475 = vsel %vm396, %v474, %v470
    %v476 = vlaneseq
    %v477 = vshrl.u32 %v476, 7
    %v478 = vsub.s32 %v344, %v477
    %v479 = vrot.slane %v161, %v478
    %v480 = vlaneseq
    %v481 = vshrl.u32 %v480, 7
    %v482 = vsub.s32 %v349, %v481
    %v483 = vrot.slane %v164, %v482
    %v484 = vsel %vm354, %v483, %v479
    %v485 = vlaneseq
    %v486 = vshrl.u32 %v485, 7
    %v487 = vsub.s32 %v356, %v486
    %v488 = vrot.slane %v167, %v487
    %v489 = vsel %vm361, %v488, %v484
    %v490 = vlaneseq
    %v491 = vshrl.u32 %v490, 7
    %v492 = vsub.s32 %v363, %v491
    %v493 = vrot.slane %v170, %v492
    %v494 = vsel %vm368, %v493, %v489
    %v495 = vlaneseq
    %v496 = vshrl.u32 %v495, 7
    %v497 = vsub.s32 %v370, %v496
    %v498 = vrot.slane %v173, %v497
    %v499 = vsel %vm375, %v498, %v494
    %v500 = vlaneseq
    %v501 = vshrl.u32 %v500, 7
    %v502 = vsub.s32 %v377, %v501
    %v503 = vrot.slane %v176, %v502
    %v504 = vsel %vm382, %v503, %v499
    %v505 = vlaneseq
    %v506 = vshrl.u32 %v505, 7
    %v507 = vsub.s32 %v384, %v506
    %v508 = vrot.slane %v179, %v507
    %v509 = vsel %vm389, %v508, %v504
    %v510 = vlaneseq
    %v511 = vshrl.u32 %v510, 7
    %v512 = vsub.s32 %v391, %v511
    %v513 = vrot.slane %v182, %v512
    %v514 = vsel %vm396, %v513, %v509
    %v515 = vlaneseq
    %v516 = vshrl.u32 %v515, 7
    %v517 = vsub.s32 %v344, %v516
    %v518 = vrot.slane %v185, %v517
    %v519 = vlaneseq
    %v520 = vshrl.u32 %v519, 7
    %v521 = vsub.s32 %v349, %v520
    %v522 = vrot.slane %v188, %v521
    %v523 = vsel %vm354, %v522, %v518
    %v524 = vlaneseq
    %v525 = vshrl.u32 %v524, 7
    %v526 = vsub.s32 %v356, %v525
    %v527 = vrot.slane %v191, %v526
    %v528 = vsel %vm361, %v527, %v523
    %v529 = vlaneseq
    %v530 = vshrl.u32 %v529, 7
    %v531 = vsub.s32 %v363, %v530
    %v532 = vrot.slane %v194, %v531
    %v533 = vsel %vm368, %v532, %v528
    %v534 = vlaneseq
    %v535 = vshrl.u32 %v534, 7
    %v536 = vsub.s32 %v370, %v535
    %v537 = vrot.slane %v197, %v536
    %v538 = vsel %vm375, %v537, %v533
    %v539 = vlaneseq
    %v540 = vshrl.u32 %v539, 7
    %v541 = vsub.s32 %v377, %v540
    %v542 = vrot.slane %v200, %v541
    %v543 = vsel %vm382, %v542, %v538
    %v544 = vlaneseq
    %v545 = vshrl.u32 %v544, 7
    %v546 = vsub.s32 %v384, %v545
    %v547 = vrot.slane %v203, %v546
    %v548 = vsel %vm389, %v547, %v543
    %v549 = vlaneseq
    %v550 = vshrl.u32 %v549, 7
    %v551 = vsub.s32 %v391, %v550
    %v552 = vrot.slane %v206, %v551
    %v553 = vsel %vm396, %v552, %v548
    %v554 = vlaneseq
    %v555 = vshrl.u32 %v554, 7
    %v556 = vsub.s32 %v344, %v555
    %v557 = vrot.slane %v209, %v556
    %v558 = vlaneseq
    %v559 = vshrl.u32 %v558, 7
    %v560 = vsub.s32 %v349, %v559
    %v561 = vrot.slane %v212, %v560
    %v562 = vsel %vm354, %v561, %v557
    %v563 = vlaneseq
    %v564 = vshrl.u32 %v563, 7
    %v565 = vsub.s32 %v356, %v564
    %v566 = vrot.slane %v215, %v565
    %v567 = vsel %vm361, %v566, %v562
    %v568 = vlaneseq
    %v569 = vshrl.u32 %v568, 7
    %v570 = vsub.s32 %v363, %v569
    %v571 = vrot.slane %v218, %v570
    %v572 = vsel %vm368, %v571, %v567
    %v573 = vlaneseq
    %v574 = vshrl.u32 %v573, 7
    %v575 = vsub.s32 %v370, %v574
    %v576 = vrot.slane %v221, %v575
    %v577 = vsel %vm375, %v576, %v572
    %v578 = vlaneseq
    %v579 = vshrl.u32 %v578, 7
    %v580 = vsub.s32 %v377, %v579
    %v581 = vrot.slane %v224, %v580
    %v582 = vsel %vm382, %v581, %v577
    %v583 = vlaneseq
    %v584 = vshrl.u32 %v583, 7
    %v585 = vsub.s32 %v384, %v584
    %v586 = vrot.slane %v227, %v585
    %v587 = vsel %vm389, %v586, %v582
    %v588 = vlaneseq
    %v589 = vshrl.u32 %v588, 7
    %v590 = vsub.s32 %v391, %v589
    %v591 = vrot.slane %v230, %v590
    %v592 = vsel %vm396, %v591, %v587
    %v593 = vlaneseq
    %v594 = vshrl.u32 %v593, 7
    %v595 = vsub.s32 %v344, %v594
    %v596 = vrot.slane %v233, %v595
    %v597 = vlaneseq
    %v598 = vshrl.u32 %v597, 7
    %v599 = vsub.s32 %v349, %v598
    %v600 = vrot.slane %v236, %v599
    %v601 = vsel %vm354, %v600, %v596
    %v602 = vlaneseq
    %v603 = vshrl.u32 %v602, 7
    %v604 = vsub.s32 %v356, %v603
    %v605 = vrot.slane %v239, %v604
    %v606 = vsel %vm361, %v605, %v601
    %v607 = vlaneseq
    %v608 = vshrl.u32 %v607, 7
    %v609 = vsub.s32 %v363, %v608
    %v610 = vrot.slane %v242, %v609
    %v611 = vsel %vm368, %v610, %v606
    %v612 = vlaneseq
    %v613 = vshrl.u32 %v612, 7
    %v614 = vsub.s32 %v370, %v613
    %v615 = vrot.slane %v245, %v614
    %v616 = vsel %vm375, %v615, %v611
    %v617 = vlaneseq
    %v618 = vshrl.u32 %v617, 7
    %v619 = vsub.s32 %v377, %v618
    %v620 = vrot.slane %v248, %v619
    %v621 = vsel %vm382, %v620, %v616
    %v622 = vlaneseq
    %v623 = vshrl.u32 %v622, 7
    %v624 = vsub.s32 %v384, %v623
    %v625 = vrot.slane %v251, %v624
    %v626 = vsel %vm389, %v625, %v621
    %v627 = vlaneseq
    %v628 = vshrl.u32 %v627, 7
    %v629 = vsub.s32 %v391, %v628
    %v630 = vrot.slane %v254, %v629
    %v631 = vsel %vm396, %v630, %v626
    %v632 = vlaneseq
    %v633 = vshrl.u32 %v632, 7
    %v634 = vsub.s32 %v344, %v633
    %v635 = vrot.slane %v257, %v634
    %v636 = vlaneseq
    %v637 = vshrl.u32 %v636, 7
    %v638 = vsub.s32 %v349, %v637
    %v639 = vrot.slane %v260, %v638
    %v640 = vsel %vm354, %v639, %v635
    %v641 = vlaneseq
    %v642 = vshrl.u32 %v641, 7
    %v643 = vsub.s32 %v356, %v642
    %v644 = vrot.slane %v263, %v643
    %v645 = vsel %vm361, %v644, %v640
    %v646 = vlaneseq
    %v647 = vshrl.u32 %v646, 7
    %v648 = vsub.s32 %v363, %v647
    %v649 = vrot.slane %v266, %v648
    %v650 = vsel %vm368, %v649, %v645
    %v651 = vlaneseq
    %v652 = vshrl.u32 %v651, 7
    %v653 = vsub.s32 %v370, %v652
    %v654 = vrot.slane %v269, %v653
    %v655 = vsel %vm375, %v654, %v650
    %v656 = vlaneseq
    %v657 = vshrl.u32 %v656, 7
    %v658 = vsub.s32 %v377, %v657
    %v659 = vrot.slane %v272, %v658
    %v660 = vsel %vm382, %v659, %v655
    %v661 = vlaneseq
    %v662 = vshrl.u32 %v661, 7
    %v663 = vsub.s32 %v384, %v662
    %v664 = vrot.slane %v275, %v663
    %v665 = vsel %vm389, %v664, %v660
    %v666 = vlaneseq
    %v667 = vshrl.u32 %v666, 7
    %v668 = vsub.s32 %v391, %v667
    %v669 = vrot.slane %v278, %v668
    %v670 = vsel %vm396, %v669, %v665
    %vm671 = vcmask 1041409
    %v672 = vsel %vm671, %v436, %v397
    %vm673 = vcmask 1042434
    %v674 = vsel %vm673, %v475, %v672
    %vm675 = vcmask 1043459
    %v676 = vsel %vm675, %v514, %v674
    %vm677 = vcmask 1044484
    %v678 = vsel %vm677, %v553, %v676
    %vm679 = vcmask 1045509
    %v680 = vsel %vm679, %v592, %v678
    %vm681 = vcmask 1046534
    %v682 = vsel %vm681, %v631, %v680
    %vm683 = vcmask 1047559
    %v684 = vsel %vm683, %v670, %v682
    %v686 = vadd.f32 %v85, %v684
    %vm687 = vcmask 523264
    %688 = vst.msk [vmem:[#allocation2] sm:$0xff] %vm687, %v686
    // Predicated region
    $region18: #{tpu_custom_call.1} parent=1 // pred_check
      %p689 = pneg %p15
    $region19: #{tpu_custom_call.1} parent=1 // pred_check_branch
      %691 = sbr.rel (%p689) target = $region21
    $region20: #{tpu_custom_call.1} parent=1 // pred_region
      %v692 = vld [vmem:[#allocation2] sm:$0xff]
      %v693 = vmul.f32 %v692, 0.020408163
      %v694 = vld [vmem:[%s1] sm:$0xff]
      %v695 = vld [vmem:[%s1 + $0x8] sm:$0xff]
      %v696 = vld [vmem:[%s1 + $0x10] sm:$0xff]
      %v697 = vld [vmem:[%s1 + $0x18] sm:$0xff]
      %v698 = vld [vmem:[%s1 + $0x20] sm:$0xff]
      %v699 = vld [vmem:[%s1 + $0x28] sm:$0xff]
      %v700 = vld [vmem:[%s1 + $0x30] sm:$0xff]
      %v701 = vld [vmem:[%s1 + $0x38] sm:$0xff]
      %v702 = vld [vmem:[%s2] sm:$0x1]
      %v704 = vlaneseq
      %v705 = vshrl.u32 %v704, 7
      %v706 = vsub.s32 0, %v705
      %v707 = vrot.slane %v702, %v706
      %v710 = vsel %vm687, %v693, 0
      %712 = vmatprep.subr.mxu0 0.0
      %713 = vmatpush1.msra.mxu0 0.0
      %714 = vmatprep.subr.mxu0 0.0
      %715 = vmatpush1.msra.mxu0 0.0
      %716 = vmatprep.subr.mxu0 0.0
      %717 = vmatpush1.msra.mxu0 0.0
      %718 = vmatprep.subr.mxu0 0.0
      %719 = vmatpush1.msra.mxu0 0.0
      %720 = vmatprep.subr.mxu0 0.0
      %721 = vmatpush1.msra.mxu0 0.0
      %722 = vmatprep.subr.mxu0 0.0
      %723 = vmatpush1.msra.mxu0 0.0
      %724 = vmatprep.subr.mxu0 0.0
      %725 = vmatpush1.msra.mxu0 0.0
      %726 = vmatprep.subr.mxu0 0.0
      %727 = vmatpush1.msra.mxu0 0.0
      %728 = vmatprep.subr.mxu0 0.0
      %729 = vmatpush1.msra.mxu0 %v701
      %730 = vmatprep.subr.mxu0 0.0
      %731 = vmatpush1.msra.mxu0 %v700
      %732 = vmatprep.subr.mxu0 0.0
      %733 = vmatpush1.msra.mxu0 %v699
      %734 = vmatprep.subr.mxu0 0.0
      %735 = vmatpush1.msra.mxu0 %v698
      %736 = vmatprep.subr.mxu0 0.0
      %737 = vmatpush1.msra.mxu0 %v697
      %738 = vmatprep.subr.mxu0 0.0
      %739 = vmatpush1.msra.mxu0 %v696
      %740 = vmatprep.subr.mxu0 0.0
      %741 = vmatpush1.msra.mxu0 %v695
      %742 = vmatprep.subr.mxu0 0.0
      %743 = vmatpush1.msra.mxu0 %v694
      %744 = vmatprep.subr.mxu0 0.0
      %745 = vmatpush2.msra.mxu0 0.0
      %746 = vmatprep.subr.mxu0 0.0
      %747 = vmatpush2.msra.mxu0 0.0
      %748 = vmatprep.subr.mxu0 0.0
      %749 = vmatpush2.msra.mxu0 0.0
      %750 = vmatprep.subr.mxu0 0.0
      %751 = vmatpush2.msra.mxu0 0.0
      %752 = vmatprep.subr.mxu0 0.0
      %753 = vmatpush2.msra.mxu0 0.0
      %754 = vmatprep.subr.mxu0 0.0
      %755 = vmatpush2.msra.mxu0 0.0
      %756 = vmatprep.subr.mxu0 0.0
      %757 = vmatpush2.msra.mxu0 0.0
      %758 = vmatprep.subr.mxu0 0.0
      %759 = vmatpush2.msra.mxu0 0.0
      %760 = vmatprep.subr.mxu0 0.0
      %761 = vmatpush2.msra.mxu0 0.0
      %762 = vmatprep.subr.mxu0 0.0
      %763 = vmatpush2.msra.mxu0 0.0
      %764 = vmatprep.subr.mxu0 0.0
      %765 = vmatpush2.msra.mxu0 0.0
      %766 = vmatprep.subr.mxu0 0.0
      %767 = vmatpush2.msra.mxu0 0.0
      %768 = vmatprep.subr.mxu0 0.0
      %769 = vmatpush2.msra.mxu0 0.0
      %770 = vmatprep.subr.mxu0 0.0
      %771 = vmatpush2.msra.mxu0 0.0
      %772 = vmatprep.subr.mxu0 0.0
      %773 = vmatpush2.msra.mxu0 0.0
      %774 = vmatprep.subr.mxu0 0.0
      %775 = vmatpush2.msra.mxu0 0.0
      %776 = vmatprep.mubr.f32.mxu0 0.0
      %777 = vmatmul.mubr.f32.gmra.mxu0 %v710
      %v778 = vpop.f32.mrf.mxu0
      %v779 = vadd.f32 %v707, %v778
      %v780 = vpop.f32.mrf.mxu0
      %781 = vdwg.mxu0
      %782 = vst [vmem:[#allocation3] sm:$0xff] %v779
    $region21: #{tpu_custom_call.1} parent=1 // pred_fallthru
      _
    // Predicated region
    $region22: #{tpu_custom_call.1} parent=1 // pred_check
      _
    $region23: #{tpu_custom_call.1} parent=1 // pred_check_branch
      %784 = sbr.rel (0) target = $region25
    $region24: #{tpu_custom_call.1} parent=1 // pred_region
      %s786 = ssub.s32 128, 128
      %787 = vsyncadd [#allocation4], %s786
      %s789 = sshll.u32 [#allocation3], 4
      %s790 = int_to_ptr.vmem [resolvable:$true] %s789
      %792 = dma.vmem_to_hbm [thread:$0]  %s790, 128, %s3, [#allocation4]
    $region25: #{tpu_custom_call.1} parent=1 // pred_fallthru
      _
    // Predicated region
    $region26: #{tpu_custom_call.1} parent=1 // pred_check
      _
    $region27: #{tpu_custom_call.1} parent=1 // pred_check_branch
      %794 = sbr.rel (0) target = $region29
    $region28: #{tpu_custom_call.1} parent=1 // pred_region
      %795 = dma.done [#allocation4], 128
    $region29: #{tpu_custom_call.1} parent=1 // pred_fallthru
      _
    %796 = vsyncpa [#allocation4], 1

// kernel: tpu_custom_call.1
$region0: #{tpu_custom_call.1}
  #allocation0 [shape = 'u32[]', space=smem, size = 0x4, offset = 0x4, fixed_abs, tag = 'smem constant byte address 0x4 - core index']
  #allocation1 [shape = 'u32[144,128]{1,0:T(1,128)}', space=vmem, size = 0x12000, scoped, tag = 'internal scratch']
  #allocation2 [shape = 'f32[8,64]{1,0:T(8,128)}', space=vmem, size = 0x1000, scoped, tag = 'scratch operand']
  %s0 = inlined_call_operand.vmem [shape: f32[8,64,49], index: 0, kind: input, shape index: {}]
  %s1 = inlined_call_operand.vmem [shape: f32[64,128], index: 1, kind: input, shape index: {}]
  %s2 = inlined_call_operand.vmem [shape: f32[1,128], index: 2, kind: input, shape index: {}]
  %s3 = inlined_call_operand.hbm [shape: f32[8,128], index: 3, kind: output, shape index: {}]
  %s4 = sld [smem:[#allocation0]]
  $region30: #{tpu_custom_call.1} parent=0
    _
  %s6 = ssub.s32 1, %s4
  %s7 = scalar_select 0, %s6, %s4
  $region1: #{tpu_custom_call.1} parent=0
    #allocation3 [shape = 'u8[4096]{0}', space=vmem, size = 0x1000, scoped, tag = 'output window, operand 0, single buffered']
    #allocation4 [shape = 's32[1]{0}', space=sflag, size = 0x4, scoped, tag = 'scoped memory for tpu_custom_call.1']
    %8 = vsyncpa [#allocation4], 0
    // Predicated region
    $region2: #{tpu_custom_call.1} parent=1 // pred_check
      _
    $region3: #{tpu_custom_call.1} parent=1 // pred_check_branch
      %10 = sbr.rel (0) target = $region5
    $region4: #{tpu_custom_call.1} parent=1 // pred_region
      _
    $region5: #{tpu_custom_call.1} parent=1 // pred_fallthru
      _
    // Predicated region
    $region6: #{tpu_custom_call.1} parent=1 // pred_check
      _
    $region7: #{tpu_custom_call.1} parent=1 // pred_check_branch
      %12 = sbr.rel (0) target = $region9
    $region8: #{tpu_custom_call.1} parent=1 // pred_region
      _
    $region9: #{tpu_custom_call.1} parent=1 // pred_fallthru
      _
    // Predicated region
    $region10: #{tpu_custom_call.1} parent=1 // pred_check
      _
    $region11: #{tpu_custom_call.1} parent=1 // pred_check_branch
      %14 = sbr.rel (0) target = $region13
    $region12: #{tpu_custom_call.1} parent=1 // pred_region
      _
    $region13: #{tpu_custom_call.1} parent=1 // pred_fallthru
      _
    %p15 = scmp.eq.s32.totalorder 0, 0
    // Predicated region
    $region14: #{tpu_custom_call.1} parent=1 // pred_check
      %p16 = pneg %p15
    $region15: #{tpu_custom_call.1} parent=1 // pred_check_branch
      %18 = sbr.rel (%p16) target = $region17
    $region16: #{tpu_custom_call.1} parent=1 // pred_region
      %vm19 = vcmask 523264
      %20 = vst.msk [vmem:[#allocation2] sm:$0xff] %vm19, 0.0
    $region17: #{tpu_custom_call.1} parent=1 // pred_fallthru
      _
    %v21 = vld [vmem:[%s0] sm:$0xff]
    %v22 = vld [vmem:[%s0 + $0x8] sm:$0xff]
    %v23 = vld [vmem:[%s0 + $0x10] sm:$0xff]
    %v24 = vld [vmem:[%s0 + $0x18] sm:$0xff]
    %v25 = vld [vmem:[%s0 + $0x20] sm:$0xff]
    %v26 = vld [vmem:[%s0 + $0x28] sm:$0xff]
    %v27 = vld [vmem:[%s0 + $0x30] sm:$0xff]
    %v28 = vld [vmem:[%s0 + $0x38] sm:$0xff]
    %v29 = vld [vmem:[%s0 + $0x40] sm:$0xff]
    %v30 = vld [vmem:[%s0 + $0x48] sm:$0xff]
    %v31 = vld [vmem:[%s0 + $0x50] sm:$0xff]
    %v32 = vld [vmem:[%s0 + $0x58] sm:$0xff]
    %v33 = vld [vmem:[%s0 + $0x60] sm:$0xff]
    %v34 = vld [vmem:[%s0 + $0x68] sm:$0xff]
    %v35 = vld [vmem:[%s0 + $0x70] sm:$0xff]
    %v36 = vld [vmem:[%s0 + $0x78] sm:$0xff]
    %v37 = vld [vmem:[%s0 + $0x80] sm:$0xff]
    %v38 = vld [vmem:[%s0 + $0x88] sm:$0xff]
    %v39 = vld [vmem:[%s0 + $0x90] sm:$0xff]
    %v40 = vld [vmem:[%s0 + $0x98] sm:$0xff]
    %v41 = vld [vmem:[%s0 + $0xa0] sm:$0xff]
    %v42 = vld [vmem:[%s0 + $0xa8] sm:$0xff]
    %v43 = vld [vmem:[%s0 + $0xb0] sm:$0xff]
    %v44 = vld [vmem:[%s0 + $0xb8] sm:$0xff]
    %v45 = vld [vmem:[%s0 + $0xc0] sm:$0xff]
    %v46 = vld [vmem:[%s0 + $0xc8] sm:$0xff]
    %v47 = vld [vmem:[%s0 + $0xd0] sm:$0xff]
    %v48 = vld [vmem:[%s0 + $0xd8] sm:$0xff]
    %v49 = vld [vmem:[%s0 + $0xe0] sm:$0xff]
    %v50 = vld [vmem:[%s0 + $0xe8] sm:$0xff]
    %v51 = vld [vmem:[%s0 + $0xf0] sm:$0xff]
    %v52 = vld [vmem:[%s0 + $0xf8] sm:$0xff]
    %v53 = vld [vmem:[%s0 + $0x100] sm:$0xff]
    %v54 = vld [vmem:[%s0 + $0x108] sm:$0xff]
    %v55 = vld [vmem:[%s0 + $0x110] sm:$0xff]
    %v56 = vld [vmem:[%s0 + $0x118] sm:$0xff]
    %v57 = vld [vmem:[%s0 + $0x120] sm:$0xff]
    %v58 = vld [vmem:[%s0 + $0x128] sm:$0xff]
    %v59 = vld [vmem:[%s0 + $0x130] sm:$0xff]
    %v60 = vld [vmem:[%s0 + $0x138] sm:$0xff]
    %v61 = vld [vmem:[%s0 + $0x140] sm:$0xff]
    %v62 = vld [vmem:[%s0 + $0x148] sm:$0xff]
    %v63 = vld [vmem:[%s0 + $0x150] sm:$0xff]
    %v64 = vld [vmem:[%s0 + $0x158] sm:$0xff]
    %v65 = vld [vmem:[%s0 + $0x160] sm:$0xff]
    %v66 = vld [vmem:[%s0 + $0x168] sm:$0xff]
    %v67 = vld [vmem:[%s0 + $0x170] sm:$0xff]
    %v68 = vld [vmem:[%s0 + $0x178] sm:$0xff]
    %v69 = vld [vmem:[%s0 + $0x180] sm:$0xff]
    %v70 = vld [vmem:[%s0 + $0x188] sm:$0xff]
    %v71 = vld [vmem:[%s0 + $0x190] sm:$0xff]
    %v72 = vld [vmem:[%s0 + $0x198] sm:$0xff]
    %v73 = vld [vmem:[%s0 + $0x1a0] sm:$0xff]
    %v74 = vld [vmem:[%s0 + $0x1a8] sm:$0xff]
    %v75 = vld [vmem:[%s0 + $0x1b0] sm:$0xff]
    %v76 = vld [vmem:[%s0 + $0x1b8] sm:$0xff]
    %v77 = vld [vmem:[%s0 + $0x1c0] sm:$0xff]
    %v78 = vld [vmem:[%s0 + $0x1c8] sm:$0xff]
    %v79 = vld [vmem:[%s0 + $0x1d0] sm:$0xff]
    %v80 = vld [vmem:[%s0 + $0x1d8] sm:$0xff]
    %v81 = vld [vmem:[%s0 + $0x1e0] sm:$0xff]
    %v82 = vld [vmem:[%s0 + $0x1e8] sm:$0xff]
    %v83 = vld [vmem:[%s0 + $0x1f0] sm:$0xff]
    %v84 = vld [vmem:[%s0 + $0x1f8] sm:$0xff]
    %v85 = vld [vmem:[#allocation2] sm:$0xff]
    %vm86 = vcmask 400384
    %v87 = vsel %vm86, %v21, 0.0
    %88 = vadd.xlane.f32.xlu0 %v87
    %v89 = vpop.xlane.xlu0 %88
    %v90 = vsel %vm86, %v22, 0.0
    %91 = vadd.xlane.f32.xlu0 %v90
    %v92 = vpop.xlane.xlu0 %91
    %v93 = vsel %vm86, %v23, 0.0
    %94 = vadd.xlane.f32.xlu0 %v93
    %v95 = vpop.xlane.xlu0 %94
    %v96 = vsel %vm86, %v24, 0.0
    %97 = vadd.xlane.f32.xlu0 %v96
    %v98 = vpop.xlane.xlu0 %97
    %v99 = vsel %vm86, %v25, 0.0
    %100 = vadd.xlane.f32.xlu0 %v99
    %v101 = vpop.xlane.xlu0 %100
    %v102 = vsel %vm86, %v26, 0.0
    %103 = vadd.xlane.f32.xlu0 %v102
    %v104 = vpop.xlane.xlu0 %103
    %v105 = vsel %vm86, %v27, 0.0
    %106 = vadd.xlane.f32.xlu0 %v105
    %v107 = vpop.xlane.xlu0 %106
    %v108 = vsel %vm86, %v28, 0.0
    %109 = vadd.xlane.f32.xlu0 %v108
    %v110 = vpop.xlane.xlu0 %109
    %v111 = vsel %vm86, %v29, 0.0
    %112 = vadd.xlane.f32.xlu0 %v111
    %v113 = vpop.xlane.xlu0 %112
    %v114 = vsel %vm86, %v30, 0.0
    %115 = vadd.xlane.f32.xlu0 %v114
    %v116 = vpop.xlane.xlu0 %115
    %v117 = vsel %vm86, %v31, 0.0
    %118 = vadd.xlane.f32.xlu0 %v117
    %v119 = vpop.xlane.xlu0 %118
    %v120 = vsel %vm86, %v32, 0.0
    %121 = vadd.xlane.f32.xlu0 %v120
    %v122 = vpop.xlane.xlu0 %121
    %v123 = vsel %vm86, %v33, 0.0
    %124 = vadd.xlane.f32.xlu0 %v123
    %v125 = vpop.xlane.xlu0 %124
    %v126 = vsel %vm86, %v34, 0.0
    %127 = vadd.xlane.f32.xlu0 %v126
    %v128 = vpop.xlane.xlu0 %127
    %v129 = vsel %vm86, %v35, 0.0
    %130 = vadd.xlane.f32.xlu0 %v129
    %v131 = vpop.xlane.xlu0 %130
    %v132 = vsel %vm86, %v36, 0.0
    %133 = vadd.xlane.f32.xlu0 %v132
    %v134 = vpop.xlane.xlu0 %133
    %v135 = vsel %vm86, %v37, 0.0
    %136 = vadd.xlane.f32.xlu0 %v135
    %v137 = vpop.xlane.xlu0 %136
    %v138 = vsel %vm86, %v38, 0.0
    %139 = vadd.xlane.f32.xlu0 %v138
    %v140 = vpop.xlane.xlu0 %139
    %v141 = vsel %vm86, %v39, 0.0
    %142 = vadd.xlane.f32.xlu0 %v141
    %v143 = vpop.xlane.xlu0 %142
    %v144 = vsel %vm86, %v40, 0.0
    %145 = vadd.xlane.f32.xlu0 %v144
    %v146 = vpop.xlane.xlu0 %145
    %v147 = vsel %vm86, %v41, 0.0
    %148 = vadd.xlane.f32.xlu0 %v147
    %v149 = vpop.xlane.xlu0 %148
    %v150 = vsel %vm86, %v42, 0.0
    %151 = vadd.xlane.f32.xlu0 %v150
    %v152 = vpop.xlane.xlu0 %151
    %v153 = vsel %vm86, %v43, 0.0
    %154 = vadd.xlane.f32.xlu0 %v153
    %v155 = vpop.xlane.xlu0 %154
    %v156 = vsel %vm86, %v44, 0.0
    %157 = vadd.xlane.f32.xlu0 %v156
    %v158 = vpop.xlane.xlu0 %157
    %v159 = vsel %vm86, %v45, 0.0
    %160 = vadd.xlane.f32.xlu0 %v159
    %v161 = vpop.xlane.xlu0 %160
    %v162 = vsel %vm86, %v46, 0.0
    %163 = vadd.xlane.f32.xlu0 %v162
    %v164 = vpop.xlane.xlu0 %163
    %v165 = vsel %vm86, %v47, 0.0
    %166 = vadd.xlane.f32.xlu0 %v165
    %v167 = vpop.xlane.xlu0 %166
    %v168 = vsel %vm86, %v48, 0.0
    %169 = vadd.xlane.f32.xlu0 %v168
    %v170 = vpop.xlane.xlu0 %169
    %v171 = vsel %vm86, %v49, 0.0
    %172 = vadd.xlane.f32.xlu0 %v171
    %v173 = vpop.xlane.xlu0 %172
    %v174 = vsel %vm86, %v50, 0.0
    %175 = vadd.xlane.f32.xlu0 %v174
    %v176 = vpop.xlane.xlu0 %175
    %v177 = vsel %vm86, %v51, 0.0
    %178 = vadd.xlane.f32.xlu0 %v177
    %v179 = vpop.xlane.xlu0 %178
    %v180 = vsel %vm86, %v52, 0.0
    %181 = vadd.xlane.f32.xlu0 %v180
    %v182 = vpop.xlane.xlu0 %181
    %v183 = vsel %vm86, %v53, 0.0
    %184 = vadd.xlane.f32.xlu0 %v183
    %v185 = vpop.xlane.xlu0 %184
    %v186 = vsel %vm86, %v54, 0.0
    %187 = vadd.xlane.f32.xlu0 %v186
    %v188 = vpop.xlane.xlu0 %187
    %v189 = vsel %vm86, %v55, 0.0
    %190 = vadd.xlane.f32.xlu0 %v189
    %v191 = vpop.xlane.xlu0 %190
    %v192 = vsel %vm86, %v56, 0.0
    %193 = vadd.xlane.f32.xlu0 %v192
    %v194 = vpop.xlane.xlu0 %193
    %v195 = vsel %vm86, %v57, 0.0
    %196 = vadd.xlane.f32.xlu0 %v195
    %v197 = vpop.xlane.xlu0 %196
    %v198 = vsel %vm86, %v58, 0.0
    %199 = vadd.xlane.f32.xlu0 %v198
    %v200 = vpop.xlane.xlu0 %199
    %v201 = vsel %vm86, %v59, 0.0
    %202 = vadd.xlane.f32.xlu0 %v201
    %v203 = vpop.xlane.xlu0 %202
    %v204 = vsel %vm86, %v60, 0.0
    %205 = vadd.xlane.f32.xlu0 %v204
    %v206 = vpop.xlane.xlu0 %205
    %v207 = vsel %vm86, %v61, 0.0
    %208 = vadd.xlane.f32.xlu0 %v207
    %v209 = vpop.xlane.xlu0 %208
    %v210 = vsel %vm86, %v62, 0.0
    %211 = vadd.xlane.f32.xlu0 %v210
    %v212 = vpop.xlane.xlu0 %211
    %v213 = vsel %vm86, %v63, 0.0
    %214 = vadd.xlane.f32.xlu0 %v213
    %v215 = vpop.xlane.xlu0 %214
    %v216 = vsel %vm86, %v64, 0.0
    %217 = vadd.xlane.f32.xlu0 %v216
    %v218 = vpop.xlane.xlu0 %217
    %v219 = vsel %vm86, %v65, 0.0
    %220 = vadd.xlane.f32.xlu0 %v219
    %v221 = vpop.xlane.xlu0 %220
    %v222 = vsel %vm86, %v66, 0.0
    %223 = vadd.xlane.f32.xlu0 %v222
    %v224 = vpop.xlane.xlu0 %223
    %v225 = vsel %vm86, %v67, 0.0
    %226 = vadd.xlane.f32.xlu0 %v225
    %v227 = vpop.xlane.xlu0 %226
    %v228 = vsel %vm86, %v68, 0.0
    %229 = vadd.xlane.f32.xlu0 %v228
    %v230 = vpop.xlane.xlu0 %229
    %v231 = vsel %vm86, %v69, 0.0
    %232 = vadd.xlane.f32.xlu0 %v231
    %v233 = vpop.xlane.xlu0 %232
    %v234 = vsel %vm86, %v70, 0.0
    %235 = vadd.xlane.f32.xlu0 %v234
    %v236 = vpop.xlane.xlu0 %235
    %v237 = vsel %vm86, %v71, 0.0
    %238 = vadd.xlane.f32.xlu0 %v237
    %v239 = vpop.xlane.xlu0 %238
    %v240 = vsel %vm86, %v72, 0.0
    %241 = vadd.xlane.f32.xlu0 %v240
    %v242 = vpop.xlane.xlu0 %241
    %v243 = vsel %vm86, %v73, 0.0
    %244 = vadd.xlane.f32.xlu0 %v243
    %v245 = vpop.xlane.xlu0 %244
    %v246 = vsel %vm86, %v74, 0.0
    %247 = vadd.xlane.f32.xlu0 %v246
    %v248 = vpop.xlane.xlu0 %247
    %v249 = vsel %vm86, %v75, 0.0
    %250 = vadd.xlane.f32.xlu0 %v249
    %v251 = vpop.xlane.xlu0 %250
    %v252 = vsel %vm86, %v76, 0.0
    %253 = vadd.xlane.f32.xlu0 %v252
    %v254 = vpop.xlane.xlu0 %253
    %v255 = vsel %vm86, %v77, 0.0
    %256 = vadd.xlane.f32.xlu0 %v255
    %v257 = vpop.xlane.xlu0 %256
    %v258 = vsel %vm86, %v78, 0.0
    %259 = vadd.xlane.f32.xlu0 %v258
    %v260 = vpop.xlane.xlu0 %259
    %v261 = vsel %vm86, %v79, 0.0
    %262 = vadd.xlane.f32.xlu0 %v261
    %v263 = vpop.xlane.xlu0 %262
    %v264 = vsel %vm86, %v80, 0.0
    %265 = vadd.xlane.f32.xlu0 %v264
    %v266 = vpop.xlane.xlu0 %265
    %v267 = vsel %vm86, %v81, 0.0
    %268 = vadd.xlane.f32.xlu0 %v267
    %v269 = vpop.xlane.xlu0 %268
    %v270 = vsel %vm86, %v82, 0.0
    %271 = vadd.xlane.f32.xlu0 %v270
    %v272 = vpop.xlane.xlu0 %271
    %v273 = vsel %vm86, %v83, 0.0
    %274 = vadd.xlane.f32.xlu0 %v273
    %v275 = vpop.xlane.xlu0 %274
    %v276 = vsel %vm86, %v84, 0.0
    %277 = vadd.xlane.f32.xlu0 %v276
    %v278 = vpop.xlane.xlu0 %277
    %v343 = vlaneseq
    %v344 = vand.u32 %v343, 127
    %v345 = vlaneseq
    %v346 = vshrl.u32 %v345, 7
    %v347 = vsub.s32 %v344, %v346
    %v348 = vrot.slane %v89, %v347
    %v349 = vadd.s32 %v344, 4294967288
    %v350 = vlaneseq
    %v351 = vshrl.u32 %v350, 7
    %v352 = vsub.s32 %v349, %v351
    %v353 = vrot.slane %v92, %v352
    %vm354 = vcmask 130112
    %v355 = vsel %vm354, %v353, %v348
    %v356 = vadd.s32 %v344, 4294967280
    %v357 = vlaneseq
    %v358 = vshrl.u32 %v357, 7
    %v359 = vsub.s32 %v356, %v358
    %v360 = vrot.slane %v95, %v359
    %vm361 = vcmask 195712
    %v362 = vsel %vm361, %v360, %v355
    %v363 = vadd.s32 %v344, 4294967272
    %v364 = vlaneseq
    %v365 = vshrl.u32 %v364, 7
    %v366 = vsub.s32 %v363, %v365
    %v367 = vrot.slane %v98, %v366
    %vm368 = vcmask 261312
    %v369 = vsel %vm368, %v367, %v362
    %v370 = vadd.s32 %v344, 4294967264
    %v371 = vlaneseq
    %v372 = vshrl.u32 %v371, 7
    %v373 = vsub.s32 %v370, %v372
    %v374 = vrot.slane %v101, %v373
    %vm375 = vcmask 326912
    %v376 = vsel %vm375, %v374, %v369
    %v377 = vadd.s32 %v344, 4294967256
    %v378 = vlaneseq
    %v379 = vshrl.u32 %v378, 7
    %v380 = vsub.s32 %v377, %v379
    %v381 = vrot.slane %v104, %v380
    %vm382 = vcmask 392512
    %v383 = vsel %vm382, %v381, %v376
    %v384 = vadd.s32 %v344, 4294967248
    %v385 = vlaneseq
    %v386 = vshrl.u32 %v385, 7
    %v387 = vsub.s32 %v384, %v386
    %v388 = vrot.slane %v107, %v387
    %vm389 = vcmask 458112
    %v390 = vsel %vm389, %v388, %v383
    %v391 = vadd.s32 %v344, 4294967240
    %v392 = vlaneseq
    %v393 = vshrl.u32 %v392, 7
    %v394 = vsub.s32 %v391, %v393
    %v395 = vrot.slane %v110, %v394
    %vm396 = vcmask 523712
    %v397 = vsel %vm396, %v395, %v390
    %v398 = vlaneseq
    %v399 = vshrl.u32 %v398, 7
    %v400 = vsub.s32 %v344, %v399
    %v401 = vrot.slane %v113, %v400
    %v402 = vlaneseq
    %v403 = vshrl.u32 %v402, 7
    %v404 = vsub.s32 %v349, %v403
    %v405 = vrot.slane %v116, %v404
    %v406 = vsel %vm354, %v405, %v401
    %v407 = vlaneseq
    %v408 = vshrl.u32 %v407, 7
    %v409 = vsub.s32 %v356, %v408
    %v410 = vrot.slane %v119, %v409
    %v411 = vsel %vm361, %v410, %v406
    %v412 = vlaneseq
    %v413 = vshrl.u32 %v412, 7
    %v414 = vsub.s32 %v363, %v413
    %v415 = vrot.slane %v122, %v414
    %v416 = vsel %vm368, %v415, %v411
    %v417 = vlaneseq
    %v418 = vshrl.u32 %v417, 7
    %v419 = vsub.s32 %v370, %v418
    %v420 = vrot.slane %v125, %v419
    %v421 = vsel %vm375, %v420, %v416
    %v422 = vlaneseq
    %v423 = vshrl.u32 %v422, 7
    %v424 = vsub.s32 %v377, %v423
    %v425 = vrot.slane %v128, %v424
    %v426 = vsel %vm382, %v425, %v421
    %v427 = vlaneseq
    %v428 = vshrl.u32 %v427, 7
    %v429 = vsub.s32 %v384, %v428
    %v430 = vrot.slane %v131, %v429
    %v431 = vsel %vm389, %v430, %v426
    %v432 = vlaneseq
    %v433 = vshrl.u32 %v432, 7
    %v434 = vsub.s32 %v391, %v433
    %v435 = vrot.slane %v134, %v434
    %v436 = vsel %vm396, %v435, %v431
    %v437 = vlaneseq
    %v438 = vshrl.u32 %v437, 7
    %v439 = vsub.s32 %v344, %v438
    %v440 = vrot.slane %v137, %v439
    %v441 = vlaneseq
    %v442 = vshrl.u32 %v441, 7
    %v443 = vsub.s32 %v349, %v442
    %v444 = vrot.slane %v140, %v443
    %v445 = vsel %vm354, %v444, %v440
    %v446 = vlaneseq
    %v447 = vshrl.u32 %v446, 7
    %v448 = vsub.s32 %v356, %v447
    %v449 = vrot.slane %v143, %v448
    %v450 = vsel %vm361, %v449, %v445
    %v451 = vlaneseq
    %v452 = vshrl.u32 %v451, 7
    %v453 = vsub.s32 %v363, %v452
    %v454 = vrot.slane %v146, %v453
    %v455 = vsel %vm368, %v454, %v450
    %v456 = vlaneseq
    %v457 = vshrl.u32 %v456, 7
    %v458 = vsub.s32 %v370, %v457
    %v459 = vrot.slane %v149, %v458
    %v460 = vsel %vm375, %v459, %v455
    %v461 = vlaneseq
    %v462 = vshrl.u32 %v461, 7
    %v463 = vsub.s32 %v377, %v462
    %v464 = vrot.slane %v152, %v463
    %v465 = vsel %vm382, %v464, %v460
    %v466 = vlaneseq
    %v467 = vshrl.u32 %v466, 7
    %v468 = vsub.s32 %v384, %v467
    %v469 = vrot.slane %v155, %v468
    %v470 = vsel %vm389, %v469, %v465
    %v471 = vlaneseq
    %v472 = vshrl.u32 %v471, 7
    %v473 = vsub.s32 %v391, %v472
    %v474 = vrot.slane %v158, %v473
    %v475 = vsel %vm396, %v474, %v470
    %v476 = vlaneseq
    %v477 = vshrl.u32 %v476, 7
    %v478 = vsub.s32 %v344, %v477
    %v479 = vrot.slane %v161, %v478
    %v480 = vlaneseq
    %v481 = vshrl.u32 %v480, 7
    %v482 = vsub.s32 %v349, %v481
    %v483 = vrot.slane %v164, %v482
    %v484 = vsel %vm354, %v483, %v479
    %v485 = vlaneseq
    %v486 = vshrl.u32 %v485, 7
    %v487 = vsub.s32 %v356, %v486
    %v488 = vrot.slane %v167, %v487
    %v489 = vsel %vm361, %v488, %v484
    %v490 = vlaneseq
    %v491 = vshrl.u32 %v490, 7
    %v492 = vsub.s32 %v363, %v491
    %v493 = vrot.slane %v170, %v492
    %v494 = vsel %vm368, %v493, %v489
    %v495 = vlaneseq
    %v496 = vshrl.u32 %v495, 7
    %v497 = vsub.s32 %v370, %v496
    %v498 = vrot.slane %v173, %v497
    %v499 = vsel %vm375, %v498, %v494
    %v500 = vlaneseq
    %v501 = vshrl.u32 %v500, 7
    %v502 = vsub.s32 %v377, %v501
    %v503 = vrot.slane %v176, %v502
    %v504 = vsel %vm382, %v503, %v499
    %v505 = vlaneseq
    %v506 = vshrl.u32 %v505, 7
    %v507 = vsub.s32 %v384, %v506
    %v508 = vrot.slane %v179, %v507
    %v509 = vsel %vm389, %v508, %v504
    %v510 = vlaneseq
    %v511 = vshrl.u32 %v510, 7
    %v512 = vsub.s32 %v391, %v511
    %v513 = vrot.slane %v182, %v512
    %v514 = vsel %vm396, %v513, %v509
    %v515 = vlaneseq
    %v516 = vshrl.u32 %v515, 7
    %v517 = vsub.s32 %v344, %v516
    %v518 = vrot.slane %v185, %v517
    %v519 = vlaneseq
    %v520 = vshrl.u32 %v519, 7
    %v521 = vsub.s32 %v349, %v520
    %v522 = vrot.slane %v188, %v521
    %v523 = vsel %vm354, %v522, %v518
    %v524 = vlaneseq
    %v525 = vshrl.u32 %v524, 7
    %v526 = vsub.s32 %v356, %v525
    %v527 = vrot.slane %v191, %v526
    %v528 = vsel %vm361, %v527, %v523
    %v529 = vlaneseq
    %v530 = vshrl.u32 %v529, 7
    %v531 = vsub.s32 %v363, %v530
    %v532 = vrot.slane %v194, %v531
    %v533 = vsel %vm368, %v532, %v528
    %v534 = vlaneseq
    %v535 = vshrl.u32 %v534, 7
    %v536 = vsub.s32 %v370, %v535
    %v537 = vrot.slane %v197, %v536
    %v538 = vsel %vm375, %v537, %v533
    %v539 = vlaneseq
    %v540 = vshrl.u32 %v539, 7
    %v541 = vsub.s32 %v377, %v540
    %v542 = vrot.slane %v200, %v541
    %v543 = vsel %vm382, %v542, %v538
    %v544 = vlaneseq
    %v545 = vshrl.u32 %v544, 7
    %v546 = vsub.s32 %v384, %v545
    %v547 = vrot.slane %v203, %v546
    %v548 = vsel %vm389, %v547, %v543
    %v549 = vlaneseq
    %v550 = vshrl.u32 %v549, 7
    %v551 = vsub.s32 %v391, %v550
    %v552 = vrot.slane %v206, %v551
    %v553 = vsel %vm396, %v552, %v548
    %v554 = vlaneseq
    %v555 = vshrl.u32 %v554, 7
    %v556 = vsub.s32 %v344, %v555
    %v557 = vrot.slane %v209, %v556
    %v558 = vlaneseq
    %v559 = vshrl.u32 %v558, 7
    %v560 = vsub.s32 %v349, %v559
    %v561 = vrot.slane %v212, %v560
    %v562 = vsel %vm354, %v561, %v557
    %v563 = vlaneseq
    %v564 = vshrl.u32 %v563, 7
    %v565 = vsub.s32 %v356, %v564
    %v566 = vrot.slane %v215, %v565
    %v567 = vsel %vm361, %v566, %v562
    %v568 = vlaneseq
    %v569 = vshrl.u32 %v568, 7
    %v570 = vsub.s32 %v363, %v569
    %v571 = vrot.slane %v218, %v570
    %v572 = vsel %vm368, %v571, %v567
    %v573 = vlaneseq
    %v574 = vshrl.u32 %v573, 7
    %v575 = vsub.s32 %v370, %v574
    %v576 = vrot.slane %v221, %v575
    %v577 = vsel %vm375, %v576, %v572
    %v578 = vlaneseq
    %v579 = vshrl.u32 %v578, 7
    %v580 = vsub.s32 %v377, %v579
    %v581 = vrot.slane %v224, %v580
    %v582 = vsel %vm382, %v581, %v577
    %v583 = vlaneseq
    %v584 = vshrl.u32 %v583, 7
    %v585 = vsub.s32 %v384, %v584
    %v586 = vrot.slane %v227, %v585
    %v587 = vsel %vm389, %v586, %v582
    %v588 = vlaneseq
    %v589 = vshrl.u32 %v588, 7
    %v590 = vsub.s32 %v391, %v589
    %v591 = vrot.slane %v230, %v590
    %v592 = vsel %vm396, %v591, %v587
    %v593 = vlaneseq
    %v594 = vshrl.u32 %v593, 7
    %v595 = vsub.s32 %v344, %v594
    %v596 = vrot.slane %v233, %v595
    %v597 = vlaneseq
    %v598 = vshrl.u32 %v597, 7
    %v599 = vsub.s32 %v349, %v598
    %v600 = vrot.slane %v236, %v599
    %v601 = vsel %vm354, %v600, %v596
    %v602 = vlaneseq
    %v603 = vshrl.u32 %v602, 7
    %v604 = vsub.s32 %v356, %v603
    %v605 = vrot.slane %v239, %v604
    %v606 = vsel %vm361, %v605, %v601
    %v607 = vlaneseq
    %v608 = vshrl.u32 %v607, 7
    %v609 = vsub.s32 %v363, %v608
    %v610 = vrot.slane %v242, %v609
    %v611 = vsel %vm368, %v610, %v606
    %v612 = vlaneseq
    %v613 = vshrl.u32 %v612, 7
    %v614 = vsub.s32 %v370, %v613
    %v615 = vrot.slane %v245, %v614
    %v616 = vsel %vm375, %v615, %v611
    %v617 = vlaneseq
    %v618 = vshrl.u32 %v617, 7
    %v619 = vsub.s32 %v377, %v618
    %v620 = vrot.slane %v248, %v619
    %v621 = vsel %vm382, %v620, %v616
    %v622 = vlaneseq
    %v623 = vshrl.u32 %v622, 7
    %v624 = vsub.s32 %v384, %v623
    %v625 = vrot.slane %v251, %v624
    %v626 = vsel %vm389, %v625, %v621
    %v627 = vlaneseq
    %v628 = vshrl.u32 %v627, 7
    %v629 = vsub.s32 %v391, %v628
    %v630 = vrot.slane %v254, %v629
    %v631 = vsel %vm396, %v630, %v626
    %v632 = vlaneseq
    %v633 = vshrl.u32 %v632, 7
    %v634 = vsub.s32 %v344, %v633
    %v635 = vrot.slane %v257, %v634
    %v636 = vlaneseq
    %v637 = vshrl.u32 %v636, 7
    %v638 = vsub.s32 %v349, %v637
    %v639 = vrot.slane %v260, %v638
    %v640 = vsel %vm354, %v639, %v635
    %v641 = vlaneseq
    %v642 = vshrl.u32 %v641, 7
    %v643 = vsub.s32 %v356, %v642
    %v644 = vrot.slane %v263, %v643
    %v645 = vsel %vm361, %v644, %v640
    %v646 = vlaneseq
    %v647 = vshrl.u32 %v646, 7
    %v648 = vsub.s32 %v363, %v647
    %v649 = vrot.slane %v266, %v648
    %v650 = vsel %vm368, %v649, %v645
    %v651 = vlaneseq
    %v652 = vshrl.u32 %v651, 7
    %v653 = vsub.s32 %v370, %v652
    %v654 = vrot.slane %v269, %v653
    %v655 = vsel %vm375, %v654, %v650
    %v656 = vlaneseq
    %v657 = vshrl.u32 %v656, 7
    %v658 = vsub.s32 %v377, %v657
    %v659 = vrot.slane %v272, %v658
    %v660 = vsel %vm382, %v659, %v655
    %v661 = vlaneseq
    %v662 = vshrl.u32 %v661, 7
    %v663 = vsub.s32 %v384, %v662
    %v664 = vrot.slane %v275, %v663
    %v665 = vsel %vm389, %v664, %v660
    %v666 = vlaneseq
    %v667 = vshrl.u32 %v666, 7
    %v668 = vsub.s32 %v391, %v667
    %v669 = vrot.slane %v278, %v668
    %v670 = vsel %vm396, %v669, %v665
    %vm671 = vcmask 1041409
    %v672 = vsel %vm671, %v436, %v397
    %vm673 = vcmask 1042434
    %v674 = vsel %vm673, %v475, %v672
    %vm675 = vcmask 1043459
    %v676 = vsel %vm675, %v514, %v674
    %vm677 = vcmask 1044484
    %v678 = vsel %vm677, %v553, %v676
    %vm679 = vcmask 1045509
    %v680 = vsel %vm679, %v592, %v678
    %vm681 = vcmask 1046534
    %v682 = vsel %vm681, %v631, %v680
    %vm683 = vcmask 1047559
    %v684 = vsel %vm683, %v670, %v682
    %v686 = vadd.f32 %v85, %v684
    %vm687 = vcmask 523264
    %688 = vst.msk [vmem:[#allocation2] sm:$0xff] %vm687, %v686
    // Predicated region
    $region18: #{tpu_custom_call.1} parent=1 // pred_check
      %p689 = pneg %p15
    $region19: #{tpu_custom_call.1} parent=1 // pred_check_branch
      %691 = sbr.rel (%p689) target = $region21
    $region20: #{tpu_custom_call.1} parent=1 // pred_region
      %v692 = vld [vmem:[#allocation2] sm:$0xff]
      %v693 = vmul.f32 %v692, 0.020408163
      %v694 = vld [vmem:[%s1] sm:$0xff]
      %v695 = vld [vmem:[%s1 + $0x8] sm:$0xff]
      %v696 = vld [vmem:[%s1 + $0x10] sm:$0xff]
      %v697 = vld [vmem:[%s1 + $0x18] sm:$0xff]
      %v698 = vld [vmem:[%s1 + $0x20] sm:$0xff]
      %v699 = vld [vmem:[%s1 + $0x28] sm:$0xff]
      %v700 = vld [vmem:[%s1 + $0x30] sm:$0xff]
      %v701 = vld [vmem:[%s1 + $0x38] sm:$0xff]
      %v702 = vld [vmem:[%s2] sm:$0x1]
      %v704 = vlaneseq
      %v705 = vshrl.u32 %v704, 7
      %v706 = vsub.s32 0, %v705
      %v707 = vrot.slane %v702, %v706
      %v710 = vsel %vm687, %v693, 0
      %712 = vmatprep.subr.mxu0 0.0
      %713 = vmatpush1.msra.mxu0 0.0
      %714 = vmatprep.subr.mxu0 0.0
      %715 = vmatpush1.msra.mxu0 0.0
      %716 = vmatprep.subr.mxu0 0.0
      %717 = vmatpush1.msra.mxu0 0.0
      %718 = vmatprep.subr.mxu0 0.0
      %719 = vmatpush1.msra.mxu0 0.0
      %720 = vmatprep.subr.mxu0 0.0
      %721 = vmatpush1.msra.mxu0 0.0
      %722 = vmatprep.subr.mxu0 0.0
      %723 = vmatpush1.msra.mxu0 0.0
      %724 = vmatprep.subr.mxu0 0.0
      %725 = vmatpush1.msra.mxu0 0.0
      %726 = vmatprep.subr.mxu0 0.0
      %727 = vmatpush1.msra.mxu0 0.0
      %728 = vmatprep.subr.mxu0 0.0
      %729 = vmatpush1.msra.mxu0 %v701
      %730 = vmatprep.subr.mxu0 0.0
      %731 = vmatpush1.msra.mxu0 %v700
      %732 = vmatprep.subr.mxu0 0.0
      %733 = vmatpush1.msra.mxu0 %v699
      %734 = vmatprep.subr.mxu0 0.0
      %735 = vmatpush1.msra.mxu0 %v698
      %736 = vmatprep.subr.mxu0 0.0
      %737 = vmatpush1.msra.mxu0 %v697
      %738 = vmatprep.subr.mxu0 0.0
      %739 = vmatpush1.msra.mxu0 %v696
      %740 = vmatprep.subr.mxu0 0.0
      %741 = vmatpush1.msra.mxu0 %v695
      %742 = vmatprep.subr.mxu0 0.0
      %743 = vmatpush1.msra.mxu0 %v694
      %744 = vmatprep.subr.mxu0 0.0
      %745 = vmatpush2.msra.mxu0 0.0
      %746 = vmatprep.subr.mxu0 0.0
      %747 = vmatpush2.msra.mxu0 0.0
      %748 = vmatprep.subr.mxu0 0.0
      %749 = vmatpush2.msra.mxu0 0.0
      %750 = vmatprep.subr.mxu0 0.0
      %751 = vmatpush2.msra.mxu0 0.0
      %752 = vmatprep.subr.mxu0 0.0
      %753 = vmatpush2.msra.mxu0 0.0
      %754 = vmatprep.subr.mxu0 0.0
      %755 = vmatpush2.msra.mxu0 0.0
      %756 = vmatprep.subr.mxu0 0.0
      %757 = vmatpush2.msra.mxu0 0.0
      %758 = vmatprep.subr.mxu0 0.0
      %759 = vmatpush2.msra.mxu0 0.0
      %760 = vmatprep.subr.mxu0 0.0
      %761 = vmatpush2.msra.mxu0 0.0
      %762 = vmatprep.subr.mxu0 0.0
      %763 = vmatpush2.msra.mxu0 0.0
      %764 = vmatprep.subr.mxu0 0.0
      %765 = vmatpush2.msra.mxu0 0.0
      %766 = vmatprep.subr.mxu0 0.0
      %767 = vmatpush2.msra.mxu0 0.0
      %768 = vmatprep.subr.mxu0 0.0
      %769 = vmatpush2.msra.mxu0 0.0
      %770 = vmatprep.subr.mxu0 0.0
      %771 = vmatpush2.msra.mxu0 0.0
      %772 = vmatprep.subr.mxu0 0.0
      %773 = vmatpush2.msra.mxu0 0.0
      %774 = vmatprep.subr.mxu0 0.0
      %775 = vmatpush2.msra.mxu0 0.0
      %776 = vmatprep.mubr.f32.mxu0 0.0
      %777 = vmatmul.mubr.f32.gmra.mxu0 %v710
      %v778 = vpop.f32.mrf.mxu0
      %v779 = vadd.f32 %v707, %v778
      %v780 = vpop.f32.mrf.mxu0
      %781 = vdwg.mxu0
      %782 = vst [vmem:[#allocation3] sm:$0xff] %v779
    $region21: #{tpu_custom_call.1} parent=1 // pred_fallthru
      _
    // Predicated region
    $region22: #{tpu_custom_call.1} parent=1 // pred_check
      _
    $region23: #{tpu_custom_call.1} parent=1 // pred_check_branch
      %784 = sbr.rel (0) target = $region25
    $region24: #{tpu_custom_call.1} parent=1 // pred_region
      %s786 = ssub.s32 128, 128
      %787 = vsyncadd [#allocation4], %s786
      %s789 = sshll.u32 [#allocation3], 4
      %s790 = int_to_ptr.vmem [resolvable:$true] %s789
      %792 = dma.vmem_to_hbm [thread:$0]  %s790, 128, %s3, [#allocation4]
    $region25: #{tpu_custom_call.1} parent=1 // pred_fallthru
      _
    // Predicated region
    $region26: #{tpu_custom_call.1} parent=1 // pred_check
      _
    $region27: #{tpu_custom_call.1} parent=1 // pred_check_branch
      %794 = sbr.rel (0) target = $region29
    $region28: #{tpu_custom_call.1} parent=1 // pred_region
      %795 = dma.done [#allocation4], 128
    $region29: #{tpu_custom_call.1} parent=1 // pred_fallthru
      _
    %796 = vsyncpa [#allocation4], 1

</llo_original>
